<compile_context>
chip_gen: v6e
topology: v6e:2x2x1
jax: 0.10.0
libtpu: 0.0.40
codegen_flags: <defaults>
</compile_context>

<pallas_src>
import functools

import numpy as np
import jax
import jax.numpy as jnp
from jax.experimental import pallas as pl
from jax.experimental.pallas import tpu as pltpu


# ---------------------------------------------------------------------------
# Pallas kernel: one batch block per grid step, data layout (C, n_img*HW)
# ---------------------------------------------------------------------------
def bam2d_kernel(x_ref, masks_ref, caw_ref, bca2_ref, wsa1t_ref, bsab_ref,
                 wAf_ref, wBf_ref, o_ref, taps_ref, *, shifts, n_img, hw):
    f32 = jnp.float32
    N = n_img * hw
    ccp = wsa1t_ref.shape[0]

    # ---- spatial attention --------------------------------------------------
    # 1x1 conv C -> ccp on the MXU: (ccp, C) @ (C, N); N = n_img*HW keeps the
    # MXU columns full and amortizes per-step overhead over n_img images.
    t = jnp.dot(wsa1t_ref[...], x_ref[0], preferred_element_type=f32) + bsab_ref[0]

    def fill_taps(t_in):
        # Write the 9 shifted + border-masked copies straight into VMEM scratch
        # (no concatenate: bounds live ranges, halves redundant vector stores).
        for tap, s in enumerate(shifts):                      # static unroll
            row = tap * ccp
            if s == 0:                                        # center tap
                taps_ref[pl.ds(row, ccp), :] = t_in
            else:
                rolled = pltpu.roll(t_in, (-s) % N, 1)        # rolled[p] = t_in[p+s]
                taps_ref[pl.ds(row, ccp), :] = rolled * masks_ref[pl.ds(row, ccp), :]

    # dilated 3x3 conv #1: single fused (ccp, 9*ccp) @ (9*ccp, N) matmul
    fill_taps(t)
    t = jnp.dot(wAf_ref[...], taps_ref[...], preferred_element_type=f32) + bsab_ref[1]

    # dilated 3x3 conv #2 with wsa4 + folded BN(1) pre-folded on the host:
    # output channel dim is 1 -> VPU multiply + sublane reduction (no M=1 MXU).
    fill_taps(t)
    sa = jnp.sum(wBf_ref[...] * taps_ref[...], axis=0, keepdims=True)    # (1, N)

    # ---- channel attention + gate, segmented per image over the lane axis ----
    wca1 = caw_ref[0]              # (C, cc)
    wca2s = caw_ref[1]             # (C, cc) == sca[:,None] * wca2.T
    bca2 = bca2_ref[...]           # (C, 1)  folded: bca + sca*(wca2.T@bca1) + sa scalar bias
    for b in range(n_img):         # static unroll, lane-aligned static slices
        lo = b * hw
        xb = x_ref[0, :, pl.ds(lo, hw)]                                  # (C, HW)
        xm = jnp.mean(xb, axis=1, keepdims=True)                         # (C, 1) avg pool
        h1 = jnp.sum(wca1 * xm, axis=0, keepdims=True)                   # (1, cc)
        ca = jnp.sum(wca2s * h1, axis=1, keepdims=True) + bca2           # (C, 1)
        w_att = ca + sa[:, lo:lo + hw]                                   # (C, HW)
        gate = 1.5 + 0.5 * jnp.tanh(0.5 * w_att)                         # == 1 + sigmoid(w)
        o_ref[0, :, pl.ds(lo, hw)] = (xb * gate).astype(o_ref.dtype)


# ---------------------------------------------------------------------------
# Host helpers
# ---------------------------------------------------------------------------
def _pick_batch_block(B, cap=8):
    """Largest divisor of B that is <= cap while still leaving >= 2 grid steps."""
    best = 1
    for d in range(1, min(B, cap) + 1):
        if B % d == 0 and B // d >= 2:
            best = d
    return best


def build_tap_masks_and_shifts(H, W, dil, n_img, ccp):
    """Border masks (9*ccp, n_img*HW) and flattened tap offsets dy*W + dx."""
    HW = H * W
    p = np.arange(HW)
    hh, ww = p // W, p % W
    masks, shifts = [], []
    for ky in range(3):
        for kx in range(3):
            dy, dx = (ky - 1) * dil, (kx - 1) * dil
            valid = ((hh + dy >= 0) & (hh + dy < H) &
                     (ww + dx >= 0) & (ww + dx < W)).astype(np.float32)
            masks.append(valid)
            shifts.append(int(dy * W + dx))
    m = np.stack(masks)                                     # (9, HW)
    m = np.tile(m, (1, n_img))                              # (9, n_img*HW)
    m = np.ascontiguousarray(
        np.broadcast_to(m[:, None, :], (9, ccp, n_img * HW))
    ).reshape(9 * ccp, n_img * HW)                          # pre-broadcast to ccp sublanes
    return jnp.asarray(m), tuple(shifts)


def _prep_kernel_params(p, C):
    """Fold/transpose/pad parameters into the kernel's (C, N)-layout formats."""
    f32 = jnp.float32
    cc = p['wca1'].shape[1]
    ccp = max(8, -(-cc // 8) * 8)                           # compressed dim padded to sublane tile

    def pad_rows(a, rows):
        return jnp.pad(a, ((0, rows - a.shape[0]),) + ((0, 0),) * (a.ndim - 1))

    # --- spatial branch ---
    wsa1t = pad_rows(p['wsa1'].T.astype(f32), ccp)                        # (ccp, C)
    bsa1 = pad_rows(p['bsa1'].reshape(cc, 1).astype(f32), ccp)            # (ccp, 1)

    wA_p = jnp.pad(p['wA'].astype(f32), ((0, 0), (0, ccp - cc), (0, ccp - cc)))
    wAf = jnp.transpose(wA_p, (2, 0, 1)).reshape(ccp, 9 * ccp)            # [co, tap*ccp+ci]
    bAf = pad_rows(p['bA'].reshape(cc, 1).astype(f32), ccp)               # (ccp, 1)
    bsab = jnp.stack([bsa1, bAf])                                         # (2, ccp, 1)

    # conv B with wsa4 (cc->1 1x1) and folded BN(1) fused in
    wBv = p['wB'].astype(f32) @ p['wsa4'].astype(f32)                     # (9, cc, 1)
    wBv = jnp.pad(wBv, ((0, 0), (0, ccp - cc), (0, 0)))                   # (9, ccp, 1)
    wBf = (p['ssa'].astype(f32) * wBv.reshape(9 * ccp, 1))                # (9*ccp, 1)
    sa_bias = p['ssa'] * (p['bB'] @ p['wsa4'][:, 0]) + p['bsa']           # scalar

    # --- channel branch: fold bca1, BN(C) scale and the spatial scalar bias ---
    wca1 = p['wca1'].astype(f32)                                          # (C, cc)
    wca2s = (p['sca'][:, None] * p['wca2'].T).astype(f32)                 # (C, cc)
    caw = jnp.stack([wca1, wca2s])                                        # (2, C, cc)
    bca2 = (p['sca'] * (p['wca2'].T @ p['bca1']) + p['bca']
            + sa_bias).astype(f32).reshape(C, 1)                          # (C, 1)

    return dict(caw=caw, bca2=bca2, wsa1t=wsa1t, bsab=bsab, wAf=wAf, wBf=wBf), ccp


# ---------------------------------------------------------------------------
# Wrapper
# ---------------------------------------------------------------------------
def bam2d_pallas(x_nchw, p, dilation=4, images_per_block=None):
    B, C, H, W = x_nchw.shape
    HW = H * W

    kp, ccp = _prep_kernel_params(p, C)

    if images_per_block is None:
        images_per_block = _pick_batch_block(B)
    assert B % images_per_block == 0
    n_img = images_per_block
    G = B // n_img
    N = n_img * HW

    # Roll-wrap across image boundaries is always zeroed by the border masks
    # (valid destinations read strictly in-image sources); documented condition:
    assert dilation * (W + 1) < HW

    masks, shifts = build_tap_masks_and_shifts(H, W, dilation, n_img, ccp)

    # Layout plumbing: images of a block side-by-side on the lane axis.
    x_k = (x_nchw.reshape(G, n_img, C, HW)
           .transpose(0, 2, 1, 3)
           .reshape(G, C, N))

    const_args = (masks, kp['caw'], kp['bca2'], kp['wsa1t'], kp['bsab'],
                  kp['wAf'], kp['wBf'])

    def const_spec(a):
        nd = a.ndim
        return pl.BlockSpec(a.shape, lambda g, _nd=nd: (0,) * _nd)

    kernel = functools.partial(bam2d_kernel, shifts=shifts, n_img=n_img, hw=HW)

    out = pl.pallas_call(
        kernel,
        out_shape=jax.ShapeDtypeStruct((G, C, N), x_nchw.dtype),
        grid=(G,),
        in_specs=[pl.BlockSpec((1, C, N), lambda g: (g, 0, 0))]
                 + [const_spec(a) for a in const_args],
        out_specs=pl.BlockSpec((1, C, N), lambda g: (g, 0, 0)),
        scratch_shapes=[pltpu.VMEM((9 * ccp, N), jnp.float32)],
        compiler_params=pltpu.CompilerParams(dimension_semantics=("parallel",)),
    )(x_k, *const_args)

    return (out.reshape(G, C, n_img, HW)
            .transpose(0, 2, 1, 3)
            .reshape(B, C, H, W))


# ---------------------------------------------------------------------------
# Deterministic parameter init (shapes follow the PyTorch module's __init__)
# ---------------------------------------------------------------------------
def init_params(key, C, c):
    ks = jax.random.split(key, 14)
    n = lambda k, shape, s=0.1: (s * jax.random.normal(k, shape)).astype(jnp.float32)
    return dict(
        # channel attention branch
        wca1=n(ks[0], (C, c)), bca1=n(ks[1], (c,)),          # Conv2d(C, c, 1)
        wca2=n(ks[2], (c, C)),                               # Conv2d(c, C, 1, bias=False)
        sca=(1.0 + n(ks[3], (C,))), bca=n(ks[4], (C,)),      # folded BN(C)
        # spatial attention branch
        wsa1=n(ks[5], (C, c)), bsa1=n(ks[6], (c,)),          # Conv2d(C, c, 1)
        wA=n(ks[7], (9, c, c)), bA=n(ks[8], (c,)),           # dilated 3x3 (tap, c_in, c_out)
        wB=n(ks[9], (9, c, c)), bB=n(ks[10], (c,)),          # dilated 3x3
        wsa4=n(ks[11], (c, 1)),                              # Conv2d(c, 1, 1, bias=False)
        ssa=(1.0 + n(ks[12], ())), bsa=n(ks[13], ()),        # folded BN(1)
    )


# ---------------------------------------------------------------------------
# Pure-JAX reference (NCHW, mirrors the PyTorch forward)
# ---------------------------------------------------------------------------
def bam2d_reference(x, p, dilation=4):
    ca_in = jnp.mean(x, axis=(2, 3), keepdims=True)                       # (B,C,1,1)
    h = jnp.einsum('bihw,io->bohw', ca_in, p['wca1']) + p['bca1'][None, :, None, None]
    h = jnp.einsum('bihw,io->bohw', h, p['wca2'])
    ca = h * p['sca'][None, :, None, None] + p['bca'][None, :, None, None]

    t = jnp.einsum('bihw,io->bohw', x, p['wsa1']) + p['bsa1'][None, :, None, None]

    def dil_conv(t_in, w9, bias):
        c_in = t_in.shape[1]
        w = jnp.transpose(w9.reshape(3, 3, c_in, -1), (3, 2, 0, 1))       # OIHW
        y = jax.lax.conv_general_dilated(
            t_in, w, window_strides=(1, 1),
            padding=((dilation, dilation), (dilation, dilation)),
            rhs_dilation=(dilation, dilation),
            dimension_numbers=('NCHW', 'OIHW', 'NCHW'))
        return y + bias[None, :, None, None]

    t = dil_conv(t, p['wA'], p['bA'])
    t = dil_conv(t, p['wB'], p['bB'])
    t = jnp.einsum('bihw,io->bohw', t, p['wsa4'])
    sa = t * p['ssa'] + p['bsa']
    w = ca + sa
    return x * (1.0 + jax.nn.sigmoid(w))


if __name__ == "__main__":
    B, C, H, W = 4, 64, 16, 16          # in_dim=64, reduction_ratio=16 -> compressed=4
    reduction_ratio, dilation = 16, 4
    c = C // reduction_ratio

    key = jax.random.PRNGKey(0)
    kx, kparam = jax.random.split(key)
    x = jax.random.normal(kx, (B, C, H, W), dtype=jnp.float32)
    params = init_params(kparam, C, c)

    out = jax.block_until_ready(bam2d_pallas(x, params, dilation))
    ref = jax.block_until_ready(bam2d_reference(x, params, dilation))

    assert out.shape == x.shape and out.dtype == x.dtype
    np.testing.assert_allclose(np.asarray(out), np.asarray(ref), rtol=2e-3, atol=2e-3)
    print("KERNEL_OK")
</pallas_src>

<mosaic_0001>
module attributes {stable_mosaic.version = 11 : i64} {
  func.func @bam2d_kernel(%arg0: i32, %arg1: memref<1x64x512xf32, #tpu.memory_space<vmem>>, %arg2: memref<72x512xf32, #tpu.memory_space<vmem>>, %arg3: memref<2x64x4xf32, #tpu.memory_space<vmem>>, %arg4: memref<64x1xf32, #tpu.memory_space<vmem>>, %arg5: memref<8x64xf32, #tpu.memory_space<vmem>>, %arg6: memref<2x8x1xf32, #tpu.memory_space<vmem>>, %arg7: memref<8x72xf32, #tpu.memory_space<vmem>>, %arg8: memref<72x1xf32, #tpu.memory_space<vmem>>, %arg9: memref<1x64x512xf32, #tpu.memory_space<vmem>>, %arg10: memref<72x512xf32, #tpu.memory_space<vmem>>) attributes {dimension_semantics = [#tpu.dimension_semantics<parallel>], iteration_bounds = array<i64: 2>, scalar_prefetch = 0 : i64, scratch_operands = 1 : i64, tpu.core_type = #tpu.core_type<tc>, window_params = [{transform_indices = @transform_0, window_bounds = array<i64: 1, 64, 512>}, {pipeline_mode = #tpu.pipeline_mode<synchronous>, transform_indices = @transform_1, window_bounds = array<i64: 72, 512>}, {pipeline_mode = #tpu.pipeline_mode<synchronous>, transform_indices = @transform_2, window_bounds = array<i64: 2, 64, 4>}, {pipeline_mode = #tpu.pipeline_mode<synchronous>, transform_indices = @transform_3, window_bounds = array<i64: 64, 1>}, {pipeline_mode = #tpu.pipeline_mode<synchronous>, transform_indices = @transform_4, window_bounds = array<i64: 8, 64>}, {pipeline_mode = #tpu.pipeline_mode<synchronous>, transform_indices = @transform_5, window_bounds = array<i64: 2, 8, 1>}, {pipeline_mode = #tpu.pipeline_mode<synchronous>, transform_indices = @transform_6, window_bounds = array<i64: 8, 72>}, {pipeline_mode = #tpu.pipeline_mode<synchronous>, transform_indices = @transform_7, window_bounds = array<i64: 72, 1>}, {transform_indices = @transform_8, window_bounds = array<i64: 1, 64, 512>}]} {
    %c0 = arith.constant 0 : index
    %c0_0 = arith.constant 0 : index
    %0 = vector.load %arg5[%c0, %c0_0] : memref<8x64xf32, #tpu.memory_space<vmem>>, vector<8x64xf32>
    %c0_1 = arith.constant 0 : index
    %c0_2 = arith.constant 0 : index
    %c0_3 = arith.constant 0 : index
    %1 = vector.load %arg1[%c0_1, %c0_2, %c0_3] : memref<1x64x512xf32, #tpu.memory_space<vmem>>, vector<1x64x512xf32>
    %2 = vector.shape_cast %1 : vector<1x64x512xf32> to vector<64x512xf32>
    %cst = arith.constant dense<0.000000e+00> : vector<8x512xf32>
    %3 = tpu.matmul %0, %2, %cst {dimension_numbers = #tpu.dot_dimension_numbers<[1], [0], [0], [1], [0, 0, 1, 1], [], []>} : vector<8x64xf32>, vector<64x512xf32>, vector<8x512xf32> -> vector<8x512xf32>
    %c0_4 = arith.constant 0 : index
    %c0_5 = arith.constant 0 : index
    %c0_6 = arith.constant 0 : index
    %4 = vector.load %arg6[%c0_4, %c0_5, %c0_6] : memref<2x8x1xf32, #tpu.memory_space<vmem>>, vector<1x8x1xf32>
    %5 = vector.shape_cast %4 : vector<1x8x1xf32> to vector<8x1xf32>
    %6 = vector.broadcast %5 : vector<8x1xf32> to vector<8x512xf32>
    %7 = arith.addf %3, %6 : vector<8x512xf32>
    %c68_i32 = arith.constant 68 : i32
    %8 = tpu.dynamic_rotate %7 by %c68_i32 dim 1 : vector<8x512xf32>, i32 -> vector<8x512xf32>
    %c0_7 = arith.constant 0 : index
    %c0_8 = arith.constant 0 : index
    %9 = vector.load %arg2[%c0_7, %c0_8] : memref<72x512xf32, #tpu.memory_space<vmem>>, vector<8x512xf32>
    %10 = arith.mulf %8, %9 : vector<8x512xf32>
    %c0_9 = arith.constant 0 : index
    %c0_10 = arith.constant 0 : index
    %11 = vector.load %arg10[%c0_9, %c0_10] : memref<72x512xf32, #tpu.memory_space<vmem>>, vector<8x512xf32>
    tpu.vector_store %arg10[%c0_9, %c0_10], %10 {strides = array<i32>} : memref<72x512xf32, #tpu.memory_space<vmem>>, vector<8x512xf32>,
    %c64_i32 = arith.constant 64 : i32
    %12 = tpu.dynamic_rotate %7 by %c64_i32 dim 1 : vector<8x512xf32>, i32 -> vector<8x512xf32>
    %c8 = arith.constant 8 : index
    %c0_11 = arith.constant 0 : index
    %13 = vector.load %arg2[%c8, %c0_11] : memref<72x512xf32, #tpu.memory_space<vmem>>, vector<8x512xf32>
    %14 = arith.mulf %12, %13 : vector<8x512xf32>
    %c8_12 = arith.constant 8 : index
    %c0_13 = arith.constant 0 : index
    %15 = vector.load %arg10[%c8_12, %c0_13] : memref<72x512xf32, #tpu.memory_space<vmem>>, vector<8x512xf32>
    tpu.vector_store %arg10[%c8_12, %c0_13], %14 {strides = array<i32>} : memref<72x512xf32, #tpu.memory_space<vmem>>, vector<8x512xf32>,
    %c60_i32 = arith.constant 60 : i32
    %16 = tpu.dynamic_rotate %7 by %c60_i32 dim 1 : vector<8x512xf32>, i32 -> vector<8x512xf32>
    %c16 = arith.constant 16 : index
    %c0_14 = arith.constant 0 : index
    %17 = vector.load %arg2[%c16, %c0_14] : memref<72x512xf32, #tpu.memory_space<vmem>>, vector<8x512xf32>
    %18 = arith.mulf %16, %17 : vector<8x512xf32>
    %c16_15 = arith.constant 16 : index
    %c0_16 = arith.constant 0 : index
    %19 = vector.load %arg10[%c16_15, %c0_16] : memref<72x512xf32, #tpu.memory_space<vmem>>, vector<8x512xf32>
    tpu.vector_store %arg10[%c16_15, %c0_16], %18 {strides = array<i32>} : memref<72x512xf32, #tpu.memory_space<vmem>>, vector<8x512xf32>,
    %c4_i32 = arith.constant 4 : i32
    %20 = tpu.dynamic_rotate %7 by %c4_i32 dim 1 : vector<8x512xf32>, i32 -> vector<8x512xf32>
    %c24 = arith.constant 24 : index
    %c0_17 = arith.constant 0 : index
    %21 = vector.load %arg2[%c24, %c0_17] : memref<72x512xf32, #tpu.memory_space<vmem>>, vector<8x512xf32>
    %22 = arith.mulf %20, %21 : vector<8x512xf32>
    %c24_18 = arith.constant 24 : index
    %c0_19 = arith.constant 0 : index
    %23 = vector.load %arg10[%c24_18, %c0_19] : memref<72x512xf32, #tpu.memory_space<vmem>>, vector<8x512xf32>
    tpu.vector_store %arg10[%c24_18, %c0_19], %22 {strides = array<i32>} : memref<72x512xf32, #tpu.memory_space<vmem>>, vector<8x512xf32>,
    %c32 = arith.constant 32 : index
    %c0_20 = arith.constant 0 : index
    %24 = vector.load %arg10[%c32, %c0_20] : memref<72x512xf32, #tpu.memory_space<vmem>>, vector<8x512xf32>
    tpu.vector_store %arg10[%c32, %c0_20], %7 {strides = array<i32>} : memref<72x512xf32, #tpu.memory_space<vmem>>, vector<8x512xf32>,
    %c508_i32 = arith.constant 508 : i32
    %25 = tpu.dynamic_rotate %7 by %c508_i32 dim 1 : vector<8x512xf32>, i32 -> vector<8x512xf32>
    %c40 = arith.constant 40 : index
    %c0_21 = arith.constant 0 : index
    %26 = vector.load %arg2[%c40, %c0_21] : memref<72x512xf32, #tpu.memory_space<vmem>>, vector<8x512xf32>
    %27 = arith.mulf %25, %26 : vector<8x512xf32>
    %c40_22 = arith.constant 40 : index
    %c0_23 = arith.constant 0 : index
    %28 = vector.load %arg10[%c40_22, %c0_23] : memref<72x512xf32, #tpu.memory_space<vmem>>, vector<8x512xf32>
    tpu.vector_store %arg10[%c40_22, %c0_23], %27 {strides = array<i32>} : memref<72x512xf32, #tpu.memory_space<vmem>>, vector<8x512xf32>,
    %c452_i32 = arith.constant 452 : i32
    %29 = tpu.dynamic_rotate %7 by %c452_i32 dim 1 : vector<8x512xf32>, i32 -> vector<8x512xf32>
    %c48 = arith.constant 48 : index
    %c0_24 = arith.constant 0 : index
    %30 = vector.load %arg2[%c48, %c0_24] : memref<72x512xf32, #tpu.memory_space<vmem>>, vector<8x512xf32>
    %31 = arith.mulf %29, %30 : vector<8x512xf32>
    %c48_25 = arith.constant 48 : index
    %c0_26 = arith.constant 0 : index
    %32 = vector.load %arg10[%c48_25, %c0_26] : memref<72x512xf32, #tpu.memory_space<vmem>>, vector<8x512xf32>
    tpu.vector_store %arg10[%c48_25, %c0_26], %31 {strides = array<i32>} : memref<72x512xf32, #tpu.memory_space<vmem>>, vector<8x512xf32>,
    %c448_i32 = arith.constant 448 : i32
    %33 = tpu.dynamic_rotate %7 by %c448_i32 dim 1 : vector<8x512xf32>, i32 -> vector<8x512xf32>
    %c56 = arith.constant 56 : index
    %c0_27 = arith.constant 0 : index
    %34 = vector.load %arg2[%c56, %c0_27] : memref<72x512xf32, #tpu.memory_space<vmem>>, vector<8x512xf32>
    %35 = arith.mulf %33, %34 : vector<8x512xf32>
    %c56_28 = arith.constant 56 : index
    %c0_29 = arith.constant 0 : index
    %36 = vector.load %arg10[%c56_28, %c0_29] : memref<72x512xf32, #tpu.memory_space<vmem>>, vector<8x512xf32>
    tpu.vector_store %arg10[%c56_28, %c0_29], %35 {strides = array<i32>} : memref<72x512xf32, #tpu.memory_space<vmem>>, vector<8x512xf32>,
    %c444_i32 = arith.constant 444 : i32
    %37 = tpu.dynamic_rotate %7 by %c444_i32 dim 1 : vector<8x512xf32>, i32 -> vector<8x512xf32>
    %c64 = arith.constant 64 : index
    %c0_30 = arith.constant 0 : index
    %38 = vector.load %arg2[%c64, %c0_30] : memref<72x512xf32, #tpu.memory_space<vmem>>, vector<8x512xf32>
    %39 = arith.mulf %37, %38 : vector<8x512xf32>
    %c64_31 = arith.constant 64 : index
    %c0_32 = arith.constant 0 : index
    %40 = vector.load %arg10[%c64_31, %c0_32] : memref<72x512xf32, #tpu.memory_space<vmem>>, vector<8x512xf32>
    tpu.vector_store %arg10[%c64_31, %c0_32], %39 {strides = array<i32>} : memref<72x512xf32, #tpu.memory_space<vmem>>, vector<8x512xf32>,
    %c0_33 = arith.constant 0 : index
    %c0_34 = arith.constant 0 : index
    %41 = vector.load %arg7[%c0_33, %c0_34] : memref<8x72xf32, #tpu.memory_space<vmem>>, vector<8x72xf32>
    %c0_35 = arith.constant 0 : index
    %c0_36 = arith.constant 0 : index
    %42 = vector.load %arg10[%c0_35, %c0_36] : memref<72x512xf32, #tpu.memory_space<vmem>>, vector<72x512xf32>
    %cst_37 = arith.constant dense<0.000000e+00> : vector<8x512xf32>
    %43 = tpu.matmul %41, %42, %cst_37 {dimension_numbers = #tpu.dot_dimension_numbers<[1], [0], [0], [1], [0, 0, 1, 1], [], []>} : vector<8x72xf32>, vector<72x512xf32>, vector<8x512xf32> -> vector<8x512xf32>
    %c1 = arith.constant 1 : index
    %c0_38 = arith.constant 0 : index
    %c0_39 = arith.constant 0 : index
    %44 = vector.load %arg6[%c1, %c0_38, %c0_39] : memref<2x8x1xf32, #tpu.memory_space<vmem>>, vector<1x8x1xf32>
    %45 = vector.shape_cast %44 : vector<1x8x1xf32> to vector<8x1xf32>
    %46 = vector.broadcast %45 : vector<8x1xf32> to vector<8x512xf32>
    %47 = arith.addf %43, %46 : vector<8x512xf32>
    %c68_i32_40 = arith.constant 68 : i32
    %48 = tpu.dynamic_rotate %47 by %c68_i32_40 dim 1 : vector<8x512xf32>, i32 -> vector<8x512xf32>
    %c0_41 = arith.constant 0 : index
    %c0_42 = arith.constant 0 : index
    %49 = vector.load %arg2[%c0_41, %c0_42] : memref<72x512xf32, #tpu.memory_space<vmem>>, vector<8x512xf32>
    %50 = arith.mulf %48, %49 : vector<8x512xf32>
    %c0_43 = arith.constant 0 : index
    %c0_44 = arith.constant 0 : index
    %51 = vector.load %arg10[%c0_43, %c0_44] : memref<72x512xf32, #tpu.memory_space<vmem>>, vector<8x512xf32>
    tpu.vector_store %arg10[%c0_43, %c0_44], %50 {strides = array<i32>} : memref<72x512xf32, #tpu.memory_space<vmem>>, vector<8x512xf32>,
    %c64_i32_45 = arith.constant 64 : i32
    %52 = tpu.dynamic_rotate %47 by %c64_i32_45 dim 1 : vector<8x512xf32>, i32 -> vector<8x512xf32>
    %c8_46 = arith.constant 8 : index
    %c0_47 = arith.constant 0 : index
    %53 = vector.load %arg2[%c8_46, %c0_47] : memref<72x512xf32, #tpu.memory_space<vmem>>, vector<8x512xf32>
    %54 = arith.mulf %52, %53 : vector<8x512xf32>
    %c8_48 = arith.constant 8 : index
    %c0_49 = arith.constant 0 : index
    %55 = vector.load %arg10[%c8_48, %c0_49] : memref<72x512xf32, #tpu.memory_space<vmem>>, vector<8x512xf32>
    tpu.vector_store %arg10[%c8_48, %c0_49], %54 {strides = array<i32>} : memref<72x512xf32, #tpu.memory_space<vmem>>, vector<8x512xf32>,
    %c60_i32_50 = arith.constant 60 : i32
    %56 = tpu.dynamic_rotate %47 by %c60_i32_50 dim 1 : vector<8x512xf32>, i32 -> vector<8x512xf32>
    %c16_51 = arith.constant 16 : index
    %c0_52 = arith.constant 0 : index
    %57 = vector.load %arg2[%c16_51, %c0_52] : memref<72x512xf32, #tpu.memory_space<vmem>>, vector<8x512xf32>
    %58 = arith.mulf %56, %57 : vector<8x512xf32>
    %c16_53 = arith.constant 16 : index
    %c0_54 = arith.constant 0 : index
    %59 = vector.load %arg10[%c16_53, %c0_54] : memref<72x512xf32, #tpu.memory_space<vmem>>, vector<8x512xf32>
    tpu.vector_store %arg10[%c16_53, %c0_54], %58 {strides = array<i32>} : memref<72x512xf32, #tpu.memory_space<vmem>>, vector<8x512xf32>,
    %c4_i32_55 = arith.constant 4 : i32
    %60 = tpu.dynamic_rotate %47 by %c4_i32_55 dim 1 : vector<8x512xf32>, i32 -> vector<8x512xf32>
    %c24_56 = arith.constant 24 : index
    %c0_57 = arith.constant 0 : index
    %61 = vector.load %arg2[%c24_56, %c0_57] : memref<72x512xf32, #tpu.memory_space<vmem>>, vector<8x512xf32>
    %62 = arith.mulf %60, %61 : vector<8x512xf32>
    %c24_58 = arith.constant 24 : index
    %c0_59 = arith.constant 0 : index
    %63 = vector.load %arg10[%c24_58, %c0_59] : memref<72x512xf32, #tpu.memory_space<vmem>>, vector<8x512xf32>
    tpu.vector_store %arg10[%c24_58, %c0_59], %62 {strides = array<i32>} : memref<72x512xf32, #tpu.memory_space<vmem>>, vector<8x512xf32>,
    %c32_60 = arith.constant 32 : index
    %c0_61 = arith.constant 0 : index
    %64 = vector.load %arg10[%c32_60, %c0_61] : memref<72x512xf32, #tpu.memory_space<vmem>>, vector<8x512xf32>
    tpu.vector_store %arg10[%c32_60, %c0_61], %47 {strides = array<i32>} : memref<72x512xf32, #tpu.memory_space<vmem>>, vector<8x512xf32>,
    %c508_i32_62 = arith.constant 508 : i32
    %65 = tpu.dynamic_rotate %47 by %c508_i32_62 dim 1 : vector<8x512xf32>, i32 -> vector<8x512xf32>
    %c40_63 = arith.constant 40 : index
    %c0_64 = arith.constant 0 : index
    %66 = vector.load %arg2[%c40_63, %c0_64] : memref<72x512xf32, #tpu.memory_space<vmem>>, vector<8x512xf32>
    %67 = arith.mulf %65, %66 : vector<8x512xf32>
    %c40_65 = arith.constant 40 : index
    %c0_66 = arith.constant 0 : index
    %68 = vector.load %arg10[%c40_65, %c0_66] : memref<72x512xf32, #tpu.memory_space<vmem>>, vector<8x512xf32>
    tpu.vector_store %arg10[%c40_65, %c0_66], %67 {strides = array<i32>} : memref<72x512xf32, #tpu.memory_space<vmem>>, vector<8x512xf32>,
    %c452_i32_67 = arith.constant 452 : i32
    %69 = tpu.dynamic_rotate %47 by %c452_i32_67 dim 1 : vector<8x512xf32>, i32 -> vector<8x512xf32>
    %c48_68 = arith.constant 48 : index
    %c0_69 = arith.constant 0 : index
    %70 = vector.load %arg2[%c48_68, %c0_69] : memref<72x512xf32, #tpu.memory_space<vmem>>, vector<8x512xf32>
    %71 = arith.mulf %69, %70 : vector<8x512xf32>
    %c48_70 = arith.constant 48 : index
    %c0_71 = arith.constant 0 : index
    %72 = vector.load %arg10[%c48_70, %c0_71] : memref<72x512xf32, #tpu.memory_space<vmem>>, vector<8x512xf32>
    tpu.vector_store %arg10[%c48_70, %c0_71], %71 {strides = array<i32>} : memref<72x512xf32, #tpu.memory_space<vmem>>, vector<8x512xf32>,
    %c448_i32_72 = arith.constant 448 : i32
    %73 = tpu.dynamic_rotate %47 by %c448_i32_72 dim 1 : vector<8x512xf32>, i32 -> vector<8x512xf32>
    %c56_73 = arith.constant 56 : index
    %c0_74 = arith.constant 0 : index
    %74 = vector.load %arg2[%c56_73, %c0_74] : memref<72x512xf32, #tpu.memory_space<vmem>>, vector<8x512xf32>
    %75 = arith.mulf %73, %74 : vector<8x512xf32>
    %c56_75 = arith.constant 56 : index
    %c0_76 = arith.constant 0 : index
    %76 = vector.load %arg10[%c56_75, %c0_76] : memref<72x512xf32, #tpu.memory_space<vmem>>, vector<8x512xf32>
    tpu.vector_store %arg10[%c56_75, %c0_76], %75 {strides = array<i32>} : memref<72x512xf32, #tpu.memory_space<vmem>>, vector<8x512xf32>,
    %c444_i32_77 = arith.constant 444 : i32
    %77 = tpu.dynamic_rotate %47 by %c444_i32_77 dim 1 : vector<8x512xf32>, i32 -> vector<8x512xf32>
    %c64_78 = arith.constant 64 : index
    %c0_79 = arith.constant 0 : index
    %78 = vector.load %arg2[%c64_78, %c0_79] : memref<72x512xf32, #tpu.memory_space<vmem>>, vector<8x512xf32>
    %79 = arith.mulf %77, %78 : vector<8x512xf32>
    %c64_80 = arith.constant 64 : index
    %c0_81 = arith.constant 0 : index
    %80 = vector.load %arg10[%c64_80, %c0_81] : memref<72x512xf32, #tpu.memory_space<vmem>>, vector<8x512xf32>
    tpu.vector_store %arg10[%c64_80, %c0_81], %79 {strides = array<i32>} : memref<72x512xf32, #tpu.memory_space<vmem>>, vector<8x512xf32>,
    %c0_82 = arith.constant 0 : index
    %c0_83 = arith.constant 0 : index
    %81 = vector.load %arg8[%c0_82, %c0_83] : memref<72x1xf32, #tpu.memory_space<vmem>>, vector<72x1xf32>
    %c0_84 = arith.constant 0 : index
    %c0_85 = arith.constant 0 : index
    %82 = vector.load %arg10[%c0_84, %c0_85] : memref<72x512xf32, #tpu.memory_space<vmem>>, vector<72x512xf32>
    %83 = vector.broadcast %81 : vector<72x1xf32> to vector<72x512xf32>
    %84 = arith.mulf %83, %82 : vector<72x512xf32>
    %cst_86 = arith.constant dense<0.000000e+00> : vector<512xf32>
    %85 = vector.multi_reduction <add>, %84, %cst_86 [0] : vector<72x512xf32> to vector<512xf32>
    %86 = vector.shape_cast %85 : vector<512xf32> to vector<1x512xf32>
    %c0_87 = arith.constant 0 : index
    %c0_88 = arith.constant 0 : index
    %c0_89 = arith.constant 0 : index
    %87 = vector.load %arg3[%c0_87, %c0_88, %c0_89] : memref<2x64x4xf32, #tpu.memory_space<vmem>>, vector<1x64x4xf32>
    %88 = vector.shape_cast %87 : vector<1x64x4xf32> to vector<64x4xf32>
    %c1_90 = arith.constant 1 : index
    %c0_91 = arith.constant 0 : index
    %c0_92 = arith.constant 0 : index
    %89 = vector.load %arg3[%c1_90, %c0_91, %c0_92] : memref<2x64x4xf32, #tpu.memory_space<vmem>>, vector<1x64x4xf32>
    %90 = vector.shape_cast %89 : vector<1x64x4xf32> to vector<64x4xf32>
    %c0_93 = arith.constant 0 : index
    %c0_94 = arith.constant 0 : index
    %91 = vector.load %arg4[%c0_93, %c0_94] : memref<64x1xf32, #tpu.memory_space<vmem>>, vector<64x1xf32>
    %c0_95 = arith.constant 0 : index
    %c0_96 = arith.constant 0 : index
    %c0_97 = arith.constant 0 : index
    %92 = vector.load %arg1[%c0_95, %c0_96, %c0_97] : memref<1x64x512xf32, #tpu.memory_space<vmem>>, vector<1x64x256xf32>
    %93 = vector.shape_cast %92 : vector<1x64x256xf32> to vector<64x256xf32>
    %cst_98 = arith.constant dense<0.000000e+00> : vector<64xf32>
    %94 = vector.multi_reduction <add>, %93, %cst_98 [1] : vector<64x256xf32> to vector<64xf32>
    %95 = vector.shape_cast %94 : vector<64xf32> to vector<64x1xf32>
    %cst_99 = arith.constant 2.560000e+02 : f32
    %96 = vector.broadcast %cst_99 : f32 to vector<64x1xf32>
    %97 = arith.divf %95, %96 : vector<64x1xf32>
    %98 = vector.broadcast %97 : vector<64x1xf32> to vector<64x4xf32>
    %99 = arith.mulf %88, %98 : vector<64x4xf32>
    %cst_100 = arith.constant dense<0.000000e+00> : vector<4xf32>
    %100 = vector.multi_reduction <add>, %99, %cst_100 [0] : vector<64x4xf32> to vector<4xf32>
    %101 = vector.shape_cast %100 : vector<4xf32> to vector<1x4xf32>
    %102 = vector.broadcast %101 : vector<1x4xf32> to vector<64x4xf32>
    %103 = arith.mulf %90, %102 : vector<64x4xf32>
    %cst_101 = arith.constant dense<0.000000e+00> : vector<64xf32>
    %104 = vector.multi_reduction <add>, %103, %cst_101 [1] : vector<64x4xf32> to vector<64xf32>
    %105 = vector.shape_cast %104 : vector<64xf32> to vector<64x1xf32>
    %106 = arith.addf %105, %91 : vector<64x1xf32>
    %107 = vector.extract_strided_slice %86 {offsets = [0, 0], sizes = [1, 256], strides = [1, 1]} : vector<1x512xf32> to vector<1x256xf32>
    %108 = vector.broadcast %106 : vector<64x1xf32> to vector<64x256xf32>
    %109 = vector.broadcast %107 : vector<1x256xf32> to vector<64x256xf32>
    %110 = arith.addf %108, %109 : vector<64x256xf32>
    %cst_102 = arith.constant 5.000000e-01 : f32
    %111 = vector.broadcast %cst_102 : f32 to vector<64x256xf32>
    %112 = arith.mulf %111, %110 : vector<64x256xf32>
    %113 = math.tanh %112 : vector<64x256xf32>
    %cst_103 = arith.constant 5.000000e-01 : f32
    %114 = vector.broadcast %cst_103 : f32 to vector<64x256xf32>
    %115 = arith.mulf %114, %113 : vector<64x256xf32>
    %cst_104 = arith.constant 1.500000e+00 : f32
    %116 = vector.broadcast %cst_104 : f32 to vector<64x256xf32>
    %117 = arith.addf %116, %115 : vector<64x256xf32>
    %118 = arith.mulf %93, %117 : vector<64x256xf32>
    %c0_105 = arith.constant 0 : index
    %c0_106 = arith.constant 0 : index
    %c0_107 = arith.constant 0 : index
    %119 = vector.load %arg9[%c0_105, %c0_106, %c0_107] : memref<1x64x512xf32, #tpu.memory_space<vmem>>, vector<1x64x256xf32>
    %120 = vector.shape_cast %119 : vector<1x64x256xf32> to vector<64x256xf32>
    %121 = vector.shape_cast %118 : vector<64x256xf32> to vector<1x64x256xf32>
    tpu.vector_store %arg9[%c0_105, %c0_106, %c0_107], %121 {strides = array<i32>} : memref<1x64x512xf32, #tpu.memory_space<vmem>>, vector<1x64x256xf32>,
    %c0_108 = arith.constant 0 : index
    %c0_109 = arith.constant 0 : index
    %c256 = arith.constant 256 : index
    %122 = vector.load %arg1[%c0_108, %c0_109, %c256] : memref<1x64x512xf32, #tpu.memory_space<vmem>>, vector<1x64x256xf32>
    %123 = vector.shape_cast %122 : vector<1x64x256xf32> to vector<64x256xf32>
    %cst_110 = arith.constant dense<0.000000e+00> : vector<64xf32>
    %124 = vector.multi_reduction <add>, %123, %cst_110 [1] : vector<64x256xf32> to vector<64xf32>
    %125 = vector.shape_cast %124 : vector<64xf32> to vector<64x1xf32>
    %cst_111 = arith.constant 2.560000e+02 : f32
    %126 = vector.broadcast %cst_111 : f32 to vector<64x1xf32>
    %127 = arith.divf %125, %126 : vector<64x1xf32>
    %128 = vector.broadcast %127 : vector<64x1xf32> to vector<64x4xf32>
    %129 = arith.mulf %88, %128 : vector<64x4xf32>
    %cst_112 = arith.constant dense<0.000000e+00> : vector<4xf32>
    %130 = vector.multi_reduction <add>, %129, %cst_112 [0] : vector<64x4xf32> to vector<4xf32>
    %131 = vector.shape_cast %130 : vector<4xf32> to vector<1x4xf32>
    %132 = vector.broadcast %131 : vector<1x4xf32> to vector<64x4xf32>
    %133 = arith.mulf %90, %132 : vector<64x4xf32>
    %cst_113 = arith.constant dense<0.000000e+00> : vector<64xf32>
    %134 = vector.multi_reduction <add>, %133, %cst_113 [1] : vector<64x4xf32> to vector<64xf32>
    %135 = vector.shape_cast %134 : vector<64xf32> to vector<64x1xf32>
    %136 = arith.addf %135, %91 : vector<64x1xf32>
    %137 = vector.extract_strided_slice %86 {offsets = [0, 256], sizes = [1, 256], strides = [1, 1]} : vector<1x512xf32> to vector<1x256xf32>
    %138 = vector.broadcast %136 : vector<64x1xf32> to vector<64x256xf32>
    %139 = vector.broadcast %137 : vector<1x256xf32> to vector<64x256xf32>
    %140 = arith.addf %138, %139 : vector<64x256xf32>
    %cst_114 = arith.constant 5.000000e-01 : f32
    %141 = vector.broadcast %cst_114 : f32 to vector<64x256xf32>
    %142 = arith.mulf %141, %140 : vector<64x256xf32>
    %143 = math.tanh %142 : vector<64x256xf32>
    %cst_115 = arith.constant 5.000000e-01 : f32
    %144 = vector.broadcast %cst_115 : f32 to vector<64x256xf32>
    %145 = arith.mulf %144, %143 : vector<64x256xf32>
    %cst_116 = arith.constant 1.500000e+00 : f32
    %146 = vector.broadcast %cst_116 : f32 to vector<64x256xf32>
    %147 = arith.addf %146, %145 : vector<64x256xf32>
    %148 = arith.mulf %123, %147 : vector<64x256xf32>
    %c0_117 = arith.constant 0 : index
    %c0_118 = arith.constant 0 : index
    %c256_119 = arith.constant 256 : index
    %149 = vector.load %arg9[%c0_117, %c0_118, %c256_119] : memref<1x64x512xf32, #tpu.memory_space<vmem>>, vector<1x64x256xf32>
    %150 = vector.shape_cast %149 : vector<1x64x256xf32> to vector<64x256xf32>
    %151 = vector.shape_cast %148 : vector<64x256xf32> to vector<1x64x256xf32>
    tpu.vector_store %arg9[%c0_117, %c0_118, %c256_119], %151 {strides = array<i32>} : memref<1x64x512xf32, #tpu.memory_space<vmem>>, vector<1x64x256xf32>,
    return
  }
  func.func @transform_0(%arg0: i32) -> (i32, i32, i32) {
    %c0_i32 = arith.constant 0 : i32
    %c0_i32_0 = arith.constant 0 : i32
    %c0_i32_1 = arith.constant 0 : i32
    return %arg0, %c0_i32, %c0_i32_0 : i32, i32, i32
  }
  func.func @transform_1(%arg0: i32) -> (i32, i32) {
    %c0_i32 = arith.constant 0 : i32
    %c0_i32_0 = arith.constant 0 : i32
    %c0_i32_1 = arith.constant 0 : i32
    return %c0_i32, %c0_i32_0 : i32, i32
  }
  func.func @transform_2(%arg0: i32) -> (i32, i32, i32) {
    %c0_i32 = arith.constant 0 : i32
    %c0_i32_0 = arith.constant 0 : i32
    %c0_i32_1 = arith.constant 0 : i32
    %c0_i32_2 = arith.constant 0 : i32
    return %c0_i32, %c0_i32_0, %c0_i32_1 : i32, i32, i32
  }
  func.func @transform_3(%arg0: i32) -> (i32, i32) {
    %c0_i32 = arith.constant 0 : i32
    %c0_i32_0 = arith.constant 0 : i32
    %c0_i32_1 = arith.constant 0 : i32
    return %c0_i32, %c0_i32_0 : i32, i32
  }
  func.func @transform_4(%arg0: i32) -> (i32, i32) {
    %c0_i32 = arith.constant 0 : i32
    %c0_i32_0 = arith.constant 0 : i32
    %c0_i32_1 = arith.constant 0 : i32
    return %c0_i32, %c0_i32_0 : i32, i32
  }
  func.func @transform_5(%arg0: i32) -> (i32, i32, i32) {
    %c0_i32 = arith.constant 0 : i32
    %c0_i32_0 = arith.constant 0 : i32
    %c0_i32_1 = arith.constant 0 : i32
    %c0_i32_2 = arith.constant 0 : i32
    return %c0_i32, %c0_i32_0, %c0_i32_1 : i32, i32, i32
  }
  func.func @transform_6(%arg0: i32) -> (i32, i32) {
    %c0_i32 = arith.constant 0 : i32
    %c0_i32_0 = arith.constant 0 : i32
    %c0_i32_1 = arith.constant 0 : i32
    return %c0_i32, %c0_i32_0 : i32, i32
  }
  func.func @transform_7(%arg0: i32) -> (i32, i32) {
    %c0_i32 = arith.constant 0 : i32
    %c0_i32_0 = arith.constant 0 : i32
    %c0_i32_1 = arith.constant 0 : i32
    return %c0_i32, %c0_i32_0 : i32, i32
  }
  func.func @transform_8(%arg0: i32) -> (i32, i32, i32) {
    %c0_i32 = arith.constant 0 : i32
    %c0_i32_0 = arith.constant 0 : i32
    %c0_i32_1 = arith.constant 0 : i32
    return %arg0, %c0_i32, %c0_i32_0 : i32, i32, i32
  }
}

</mosaic_0001>

<llo_original>
// kernel: tpu_custom_call.1
$region0: #{tpu_custom_call.1}
  #allocation0 [shape = 'u32[]', space=smem, size = 0x4, offset = 0x4, fixed_abs, tag = 'smem constant byte address 0x4 - core index']
  #allocation1 [shape = 'u32[144,128]{1,0:T(1,128)}', space=vmem, size = 0x12000, scoped, tag = 'internal scratch']
  #allocation2 [shape = 'f32[72,512]{1,0:T(8,128)}', space=vmem, size = 0x24000, scoped, tag = 'scratch operand']
  %s0 = inlined_call_operand.hbm [shape: f32[2,64,512], index: 0, kind: input, shape index: {}]
  %s1 = inlined_call_operand.vmem [shape: f32[72,512], index: 1, kind: input, shape index: {}]
  %s2 = inlined_call_operand.vmem [shape: f32[2,64,4], index: 2, kind: input, shape index: {}]
  %s3 = inlined_call_operand.vmem [shape: f32[64,1], index: 3, kind: input, shape index: {}]
  %s4 = inlined_call_operand.vmem [shape: f32[8,64], index: 4, kind: input, shape index: {}]
  %s5 = inlined_call_operand.vmem [shape: f32[2,8,1], index: 5, kind: input, shape index: {}]
  %s6 = inlined_call_operand.hbm [shape: f32[8,72], index: 6, kind: input, shape index: {}]
  %s7 = inlined_call_operand.vmem [shape: f32[72,1], index: 7, kind: input, shape index: {}]
  %s8 = inlined_call_operand.hbm [shape: f32[2,64,512], index: 8, kind: output, shape index: {}]
  %s9 = sld [smem:[#allocation0]]
  $region73: #{tpu_custom_call.1} parent=0
    _
  %s11 = ssub.s32 1, %s9
  %s12 = scalar_select 0, %s11, %s9
  $region1: #{tpu_custom_call.1} parent=0
    #allocation3 [shape = 'u8[262144]{0}', space=vmem, size = 0x40000, scoped, tag = 'input window, operand 0']
    #allocation4 [shape = 's32[2]{0}', space=sflag, size = 0x8, scoped, tag = 'scoped memory for tpu_custom_call.1']
    #allocation5 [shape = 's32[2]{0}', space=sflag, size = 0x8, scoped, tag = 'scoped memory for tpu_custom_call.1']
    #allocation6 [shape = 'u8[4096]{0}', space=vmem, size = 0x1000, scoped, tag = 'input window, operand 6, single buffered']
    #allocation7 [shape = 's32[1]{0}', space=sflag, size = 0x4, scoped, tag = 'scoped memory for tpu_custom_call.1']
    #allocation8 [shape = 'u8[262144]{0}', space=vmem, size = 0x40000, scoped, tag = 'output window, operand 0']
    %13 = vsyncpa [#allocation4], 0
    %s14 = scalar_lea.sflag [#allocation4], 1
    %15 = vsyncpa %s14, 0
    %16 = vsyncpa [#allocation7], 0
    %17 = vsyncpa [#allocation5], 0
    %s18 = scalar_lea.sflag [#allocation5], 1
    %19 = vsyncpa %s18, 0
    loop: start=0, step=1, limit=4
    $region2: #{tpu_custom_call.1} parent=1 // loop_pre_header
      _
    $region3: #{tpu_custom_call.1} parent=1 // loop_header
      %s21 = sphi 0, %s25
      %p22 = scmp.ge.s32.totalorder %s21, 4
      %s31 = sphi 0, %s33
      %s34 = sphi 0, %s31
      %s35 = sphi 0, %s34
      %s51 = sphi 0, %s35
      %s55 = sphi 0, %s55
      %s57 = sphi 0, %s55
      %s58 = sphi 0, %s57
      %s72 = sphi 0, %s58
      %s76 = sphi 0, %s76
      %s78 = sphi 0, %s76
      %s79 = sphi 0, %s78
      %s93 = sphi 0, %s79
      %s97 = sphi 0, %s97
      %s99 = sphi 0, %s97
      %s100 = sphi 0, %s99
      %s114 = sphi 0, %s100
      %s118 = sphi 0, %s118
      %s120 = sphi 0, %s118
      %s121 = sphi 0, %s120
      %s135 = sphi 0, %s121
      %s139 = sphi 0, %s139
      %s141 = sphi 0, %s139
      %s142 = sphi 0, %s141
      %s156 = sphi 0, %s142
      %s160 = sphi 0, %s160
      %s162 = sphi 0, %s160
      %s163 = sphi 0, %s162
      %s177 = sphi 0, %s163
      %s181 = sphi 0, %s181
      %s183 = sphi 0, %s181
      %s184 = sphi 0, %s183
      %s198 = sphi 0, %s184
      %s204 = sphi 0, %s206
      %s207 = sphi 0, %s204
      %s208 = sphi 0, %s207
      %s224 = sphi 0, %s208
    $region4: #{tpu_custom_call.1} parent=1 // loop_header_branch
      %24 = sbr.rel (%p22) target = $region8
    $region5: #{tpu_custom_call.1} parent=1 // loop_body
      %s26 = ssub.s32 %s21, 1
      %s27 = ssub.s32 %s21, 2
      %s28 = sadd.s32 %s21, 1
      %s29 = ssub.s32 %s21, %s28
      %p30 = scmp.eq.s32.totalorder %s29, 0
      %s32 = sadd.s32 %s31, 1
      %s33 = scalar_select %p30, %s31, %s32
      %p36 = pneg %p30
      %p37 = scmp.eq.s32.totalorder %s21, 1
      %p38 = por %p36, %p37
      %p39 = scmp.ne.s32.totalorder %s31, %s34
      %p40 = scmp.eq.s32.totalorder %s21, 0
      %p41 = por %p39, %p40
      %p42 = scmp.ne.s32.totalorder %s31, %s34
      %p43 = scmp.eq.s32.totalorder %s26, 1
      %p44 = por %p42, %p43
      %p45 = scmp.ne.s32.totalorder %s34, %s35
      %p46 = scmp.eq.s32.totalorder %s26, 0
      %p47 = por %p45, %p46
      %p48 = scmp.ne.s32.totalorder %s34, %s35
      %p49 = scmp.eq.s32.totalorder %s27, 1
      %p50 = por %p48, %p49
      %p52 = scmp.ne.s32.totalorder %s35, %s51
      %p53 = scmp.eq.s32.totalorder %s27, 0
      %p54 = por %p52, %p53
      %s56 = sadd.s32 %s55, 1
      %p59 = scmp.eq.s32.totalorder %s21, 1
      %p60 = scmp.ne.s32.totalorder %s55, %s57
      %p61 = scmp.eq.s32.totalorder %s21, 0
      %p62 = por %p60, %p61
      %p63 = scmp.ne.s32.totalorder %s55, %s57
      %p64 = scmp.eq.s32.totalorder %s26, 1
      %p65 = por %p63, %p64
      %p66 = scmp.ne.s32.totalorder %s57, %s58
      %p67 = scmp.eq.s32.totalorder %s26, 0
      %p68 = por %p66, %p67
      %p69 = scmp.ne.s32.totalorder %s57, %s58
      %p70 = scmp.eq.s32.totalorder %s27, 1
      %p71 = por %p69, %p70
      %p73 = scmp.ne.s32.totalorder %s58, %s72
      %p74 = scmp.eq.s32.totalorder %s27, 0
      %p75 = por %p73, %p74
      %s77 = sadd.s32 %s76, 1
      %p80 = scmp.eq.s32.totalorder %s21, 1
      %p81 = scmp.ne.s32.totalorder %s76, %s78
      %p82 = scmp.eq.s32.totalorder %s21, 0
      %p83 = por %p81, %p82
      %p84 = scmp.ne.s32.totalorder %s76, %s78
      %p85 = scmp.eq.s32.totalorder %s26, 1
      %p86 = por %p84, %p85
      %p87 = scmp.ne.s32.totalorder %s78, %s79
      %p88 = scmp.eq.s32.totalorder %s26, 0
      %p89 = por %p87, %p88
      %p90 = scmp.ne.s32.totalorder %s78, %s79
      %p91 = scmp.eq.s32.totalorder %s27, 1
      %p92 = por %p90, %p91
      %p94 = scmp.ne.s32.totalorder %s79, %s93
      %p95 = scmp.eq.s32.totalorder %s27, 0
      %p96 = por %p94, %p95
      %s98 = sadd.s32 %s97, 1
      %p101 = scmp.eq.s32.totalorder %s21, 1
      %p102 = scmp.ne.s32.totalorder %s97, %s99
      %p103 = scmp.eq.s32.totalorder %s21, 0
      %p104 = por %p102, %p103
      %p105 = scmp.ne.s32.totalorder %s97, %s99
      %p106 = scmp.eq.s32.totalorder %s26, 1
      %p107 = por %p105, %p106
      %p108 = scmp.ne.s32.totalorder %s99, %s100
      %p109 = scmp.eq.s32.totalorder %s26, 0
      %p110 = por %p108, %p109
      %p111 = scmp.ne.s32.totalorder %s99, %s100
      %p112 = scmp.eq.s32.totalorder %s27, 1
      %p113 = por %p111, %p112
      %p115 = scmp.ne.s32.totalorder %s100, %s114
      %p116 = scmp.eq.s32.totalorder %s27, 0
      %p117 = por %p115, %p116
      %s119 = sadd.s32 %s118, 1
      %p122 = scmp.eq.s32.totalorder %s21, 1
      %p123 = scmp.ne.s32.totalorder %s118, %s120
      %p124 = scmp.eq.s32.totalorder %s21, 0
      %p125 = por %p123, %p124
      %p126 = scmp.ne.s32.totalorder %s118, %s120
      %p127 = scmp.eq.s32.totalorder %s26, 1
      %p128 = por %p126, %p127
      %p129 = scmp.ne.s32.totalorder %s120, %s121
      %p130 = scmp.eq.s32.totalorder %s26, 0
      %p131 = por %p129, %p130
      %p132 = scmp.ne.s32.totalorder %s120, %s121
      %p133 = scmp.eq.s32.totalorder %s27, 1
      %p134 = por %p132, %p133
      %p136 = scmp.ne.s32.totalorder %s121, %s135
      %p137 = scmp.eq.s32.totalorder %s27, 0
      %p138 = por %p136, %p137
      %s140 = sadd.s32 %s139, 1
      %p143 = scmp.eq.s32.totalorder %s21, 1
      %p144 = scmp.ne.s32.totalorder %s139, %s141
      %p145 = scmp.eq.s32.totalorder %s21, 0
      %p146 = por %p144, %p145
      %p147 = scmp.ne.s32.totalorder %s139, %s141
      %p148 = scmp.eq.s32.totalorder %s26, 1
      %p149 = por %p147, %p148
      %p150 = scmp.ne.s32.totalorder %s141, %s142
      %p151 = scmp.eq.s32.totalorder %s26, 0
      %p152 = por %p150, %p151
      %p153 = scmp.ne.s32.totalorder %s141, %s142
      %p154 = scmp.eq.s32.totalorder %s27, 1
      %p155 = por %p153, %p154
      %p157 = scmp.ne.s32.totalorder %s142, %s156
      %p158 = scmp.eq.s32.totalorder %s27, 0
      %p159 = por %p157, %p158
      %s161 = sadd.s32 %s160, 1
      %p164 = scmp.eq.s32.totalorder %s21, 1
      %p165 = scmp.ne.s32.totalorder %s160, %s162
      %p166 = scmp.eq.s32.totalorder %s21, 0
      %p167 = por %p165, %p166
      %p168 = scmp.ne.s32.totalorder %s160, %s162
      %p169 = scmp.eq.s32.totalorder %s26, 1
      %p170 = por %p168, %p169
      %p171 = scmp.ne.s32.totalorder %s162, %s163
      %p172 = scmp.eq.s32.totalorder %s26, 0
      %p173 = por %p171, %p172
      %p174 = scmp.ne.s32.totalorder %s162, %s163
      %p175 = scmp.eq.s32.totalorder %s27, 1
      %p176 = por %p174, %p175
      %p178 = scmp.ne.s32.totalorder %s163, %s177
      %p179 = scmp.eq.s32.totalorder %s27, 0
      %p180 = por %p178, %p179
      %s182 = sadd.s32 %s181, 1
      %p185 = scmp.eq.s32.totalorder %s21, 1
      %p186 = scmp.ne.s32.totalorder %s181, %s183
      %p187 = scmp.eq.s32.totalorder %s21, 0
      %p188 = por %p186, %p187
      %p189 = scmp.ne.s32.totalorder %s181, %s183
      %p190 = scmp.eq.s32.totalorder %s26, 1
      %p191 = por %p189, %p190
      %p192 = scmp.ne.s32.totalorder %s183, %s184
      %p193 = scmp.eq.s32.totalorder %s26, 0
      %p194 = por %p192, %p193
      %p195 = scmp.ne.s32.totalorder %s183, %s184
      %p196 = scmp.eq.s32.totalorder %s27, 1
      %p197 = por %p195, %p196
      %p199 = scmp.ne.s32.totalorder %s184, %s198
      %p200 = scmp.eq.s32.totalorder %s27, 0
      %p201 = por %p199, %p200
      %s202 = ssub.s32 %s21, %s28
      %p203 = scmp.eq.s32.totalorder %s202, 0
      %s205 = sadd.s32 %s204, 1
      %s206 = scalar_select %p203, %s204, %s205
      %p209 = pneg %p203
      %p210 = scmp.eq.s32.totalorder %s21, 1
      %p211 = por %p209, %p210
      %p212 = scmp.ne.s32.totalorder %s204, %s207
      %p213 = scmp.eq.s32.totalorder %s21, 0
      %p214 = por %p212, %p213
      %p215 = scmp.ne.s32.totalorder %s204, %s207
      %p216 = scmp.eq.s32.totalorder %s26, 1
      %p217 = por %p215, %p216
      %p218 = scmp.ne.s32.totalorder %s207, %s208
      %p219 = scmp.eq.s32.totalorder %s26, 0
      %p220 = por %p218, %p219
      %p221 = scmp.ne.s32.totalorder %s207, %s208
      %p222 = scmp.eq.s32.totalorder %s27, 1
      %p223 = por %p221, %p222
      %p225 = scmp.ne.s32.totalorder %s208, %s224
      %p226 = scmp.eq.s32.totalorder %s27, 0
      %p227 = por %p225, %p226
      %p228 = scmp.le.s32.totalorder 1, %s21
      %p229 = scmp.lt.s32.totalorder %s21, 3
      %p230 = pnand %p228, %p229
      %p231 = pneg %p230
      // Predicated region
      $region9: #{tpu_custom_call.1} parent=5 // pred_check
        _
      $region10: #{tpu_custom_call.1} parent=5 // pred_check_branch
        %233 = sbr.rel (%p230) target = $region12
      $region11: #{tpu_custom_call.1} parent=5 // pred_region
        %s234 = ssub.s32 %s21, 1
        // Predicated region
        $region13: #{tpu_custom_call.1} parent=11 // pred_check
          %p235 = pneg %p68
        $region14: #{tpu_custom_call.1} parent=11 // pred_check_branch
          %237 = sbr.rel (%p235) target = $region16
        $region15: #{tpu_custom_call.1} parent=11 // pred_region
          _
        $region16: #{tpu_custom_call.1} parent=11 // pred_fallthru
          _
        // Predicated region
        $region17: #{tpu_custom_call.1} parent=11 // pred_check
          %p238 = pneg %p89
        $region18: #{tpu_custom_call.1} parent=11 // pred_check_branch
          %240 = sbr.rel (%p238) target = $region20
        $region19: #{tpu_custom_call.1} parent=11 // pred_region
          _
        $region20: #{tpu_custom_call.1} parent=11 // pred_fallthru
          _
        // Predicated region
        $region21: #{tpu_custom_call.1} parent=11 // pred_check
          %p241 = pneg %p110
        $region22: #{tpu_custom_call.1} parent=11 // pred_check_branch
          %243 = sbr.rel (%p241) target = $region24
        $region23: #{tpu_custom_call.1} parent=11 // pred_region
          _
        $region24: #{tpu_custom_call.1} parent=11 // pred_fallthru
          _
        // Predicated region
        $region25: #{tpu_custom_call.1} parent=11 // pred_check
          %p244 = pneg %p131
        $region26: #{tpu_custom_call.1} parent=11 // pred_check_branch
          %246 = sbr.rel (%p244) target = $region28
        $region27: #{tpu_custom_call.1} parent=11 // pred_region
          _
        $region28: #{tpu_custom_call.1} parent=11 // pred_fallthru
          _
        // Predicated region
        $region29: #{tpu_custom_call.1} parent=11 // pred_check
          %p247 = pneg %p152
        $region30: #{tpu_custom_call.1} parent=11 // pred_check_branch
          %249 = sbr.rel (%p247) target = $region32
        $region31: #{tpu_custom_call.1} parent=11 // pred_region
          _
        $region32: #{tpu_custom_call.1} parent=11 // pred_fallthru
          _
        // Predicated region
        $region33: #{tpu_custom_call.1} parent=11 // pred_check
          %p250 = pneg %p173
        $region34: #{tpu_custom_call.1} parent=11 // pred_check_branch
          %252 = sbr.rel (%p250) target = $region36
        $region35: #{tpu_custom_call.1} parent=11 // pred_region
          %s254 = ssub.s32 128, 128
          %255 = vsyncadd [#allocation7], %s254
          %s257 = sshll.u32 [#allocation6], 4
          %s258 = int_to_ptr.vmem [resolvable:$true] %s257
          %260 = dma.hbm_to_vmem [thread:$0]  %s6, 128, %s258, [#allocation7]
        $region36: #{tpu_custom_call.1} parent=11 // pred_fallthru
          _
        // Predicated region
        $region37: #{tpu_custom_call.1} parent=11 // pred_check
          %p261 = pneg %p194
        $region38: #{tpu_custom_call.1} parent=11 // pred_check_branch
          %263 = sbr.rel (%p261) target = $region40
        $region39: #{tpu_custom_call.1} parent=11 // pred_region
          _
        $region40: #{tpu_custom_call.1} parent=11 // pred_fallthru
          _
      $region12: #{tpu_custom_call.1} parent=5 // pred_fallthru
        _
      %p264 = scmp.lt.s32.totalorder %s21, 2
      // Predicated region
      $region41: #{tpu_custom_call.1} parent=5 // pred_check
        %p265 = pneg %p264
      $region42: #{tpu_custom_call.1} parent=5 // pred_check_branch
        %267 = sbr.rel (%p265) target = $region44
      $region43: #{tpu_custom_call.1} parent=5 // pred_region
        // Predicated region
        $region45: #{tpu_custom_call.1} parent=43 // pred_check
          %p268 = pneg %p41
        $region46: #{tpu_custom_call.1} parent=43 // pred_check_branch
          %270 = sbr.rel (%p268) target = $region48
        $region47: #{tpu_custom_call.1} parent=43 // pred_region
          %s271 = sand.u32 %s31, 1
          %s272 = scalar_lea.sflag [#allocation4], %s271
          %s273 = sand.u32 %s31, 1
          %s274 = smul.addr %s273, 256
          %s275 = scalar_lea.vmem [#allocation3], %s274
          %s277 = ssub.s32 4096, 4096
          %278 = vsyncadd %s272, %s277
          %s279 = smul.addr %s21, 32
          %s280 = smul.addr %s279, 128
          %s281 = scalar_lea.hbm %s0, %s280
          %s282 = sshll.u32 %s275, 4
          %s283 = int_to_ptr.vmem [resolvable:$true] %s282
          %288 = dma.hbm_to_vmem [thread:$0]  %s281, 4096, %s283, %s272, 512, 512, 32
        $region48: #{tpu_custom_call.1} parent=43 // pred_fallthru
          _
      $region44: #{tpu_custom_call.1} parent=5 // pred_fallthru
        _
      %p289 = scmp.le.s32.totalorder 1, %s21
      %p290 = scmp.lt.s32.totalorder %s21, 3
      %p291 = pnand %p289, %p290
      %p292 = pneg %p291
      // Predicated region
      $region49: #{tpu_custom_call.1} parent=5 // pred_check
        _
      $region50: #{tpu_custom_call.1} parent=5 // pred_check_branch
        %294 = sbr.rel (%p291) target = $region52
      $region51: #{tpu_custom_call.1} parent=5 // pred_region
        %s295 = ssub.s32 %s21, 1
        %s296 = sand.u32 %s34, 1
        %s297 = scalar_lea.sflag [#allocation4], %s296
        %s298 = sand.u32 %s34, 1
        %s299 = smul.addr %s298, 256
        %s300 = scalar_lea.vmem [#allocation3], %s299
        // Predicated region
        $region53: #{tpu_custom_call.1} parent=51 // pred_check
          %p301 = pneg %p47
        $region54: #{tpu_custom_call.1} parent=51 // pred_check_branch
          %303 = sbr.rel (%p301) target = $region56
        $region55: #{tpu_custom_call.1} parent=51 // pred_region
          %304 = dma.done %s297, 4096
        $region56: #{tpu_custom_call.1} parent=51 // pred_fallthru
          _
        // Predicated region
        $region57: #{tpu_custom_call.1} parent=51 // pred_check
          %p305 = pneg %p173
        $region58: #{tpu_custom_call.1} parent=51 // pred_check_branch
          %307 = sbr.rel (%p305) target = $region60
        $region59: #{tpu_custom_call.1} parent=51 // pred_region
          %308 = dma.done [#allocation7], 128
        $region60: #{tpu_custom_call.1} parent=51 // pred_fallthru
          _
        %s309 = sand.u32 %s34, 1
        %s310 = scalar_lea.sflag [#allocation4], %s309
        %s311 = sand.u32 %s34, 1
        %s312 = smul.addr %s311, 256
        %s313 = scalar_lea.vmem [#allocation3], %s312
        %p314 = pneg %p47
        %p315 = pneg %p44
        %p316 = pneg %p68
        %p317 = pneg %p65
        %p318 = pneg %p89
        %p319 = pneg %p86
        %p320 = pneg %p110
        %p321 = pneg %p107
        %p322 = pneg %p131
        %p323 = pneg %p128
        %p324 = pneg %p152
        %p325 = pneg %p149
        %p326 = pneg %p173
        %p327 = pneg %p170
        %p328 = pneg %p194
        %p329 = pneg %p191
        %p330 = pneg %p220
        %p331 = pneg %p217
        %s332 = sand.u32 %s207, 1
        %s333 = scalar_lea.sflag [#allocation5], %s332
        %s334 = sand.u32 %s207, 1
        %s335 = smul.addr %s334, 256
        %s336 = scalar_lea.vmem [#allocation8], %s335
        %v337 = vld [vmem:[%s4] sm:$0xff]
        %v338 = vld [vmem:[%s300] sm:$0xff]
        %v339 = vld [vmem:[%s300 + $0x8] sm:$0xff]
        %v340 = vld [vmem:[%s300 + $0x10] sm:$0xff]
        %v341 = vld [vmem:[%s300 + $0x18] sm:$0xff]
        %v342 = vld [vmem:[%s300 + $0x20] sm:$0xff]
        %v343 = vld [vmem:[%s300 + $0x28] sm:$0xff]
        %v344 = vld [vmem:[%s300 + $0x30] sm:$0xff]
        %v345 = vld [vmem:[%s300 + $0x38] sm:$0xff]
        %v346 = vld [vmem:[%s300 + $0x40] sm:$0xff]
        %v347 = vld [vmem:[%s300 + $0x48] sm:$0xff]
        %v348 = vld [vmem:[%s300 + $0x50] sm:$0xff]
        %v349 = vld [vmem:[%s300 + $0x58] sm:$0xff]
        %v350 = vld [vmem:[%s300 + $0x60] sm:$0xff]
        %v351 = vld [vmem:[%s300 + $0x68] sm:$0xff]
        %v352 = vld [vmem:[%s300 + $0x70] sm:$0xff]
        %v353 = vld [vmem:[%s300 + $0x78] sm:$0xff]
        %v354 = vld [vmem:[%s300 + $0x80] sm:$0xff]
        %v355 = vld [vmem:[%s300 + $0x88] sm:$0xff]
        %v356 = vld [vmem:[%s300 + $0x90] sm:$0xff]
        %v357 = vld [vmem:[%s300 + $0x98] sm:$0xff]
        %v358 = vld [vmem:[%s300 + $0xa0] sm:$0xff]
        %v359 = vld [vmem:[%s300 + $0xa8] sm:$0xff]
        %v360 = vld [vmem:[%s300 + $0xb0] sm:$0xff]
        %v361 = vld [vmem:[%s300 + $0xb8] sm:$0xff]
        %v362 = vld [vmem:[%s300 + $0xc0] sm:$0xff]
        %v363 = vld [vmem:[%s300 + $0xc8] sm:$0xff]
        %v364 = vld [vmem:[%s300 + $0xd0] sm:$0xff]
        %v365 = vld [vmem:[%s300 + $0xd8] sm:$0xff]
        %v366 = vld [vmem:[%s300 + $0xe0] sm:$0xff]
        %v367 = vld [vmem:[%s300 + $0xe8] sm:$0xff]
        %v368 = vld [vmem:[%s300 + $0xf0] sm:$0xff]
        %v369 = vld [vmem:[%s300 + $0xf8] sm:$0xff]
        %v370 = vld [vmem:[%s5] sm:$0xff]
        %372 = vset.pattern.permute.xlu0 0
        %373 = vperm.xlu0 %372, %v370
        %v374 = vpop.permute.xlu0 %373
        %vm376 = vcmask 523264
        %v378 = vsel %vm376, %v337, 0
        %380 = vmatprep.subr.mxu0 0.0
        %381 = vmatpush1.msra.mxu0 0.0
        %382 = vmatprep.subr.mxu0 0.0
        %383 = vmatpush1.msra.mxu0 0.0
        %384 = vmatprep.subr.mxu0 0.0
        %385 = vmatpush1.msra.mxu0 0.0
        %386 = vmatprep.subr.mxu0 0.0
        %387 = vmatpush1.msra.mxu0 0.0
        %388 = vmatprep.subr.mxu0 0.0
        %389 = vmatpush1.msra.mxu0 0.0
        %390 = vmatprep.subr.mxu0 0.0
        %391 = vmatpush1.msra.mxu0 0.0
        %392 = vmatprep.subr.mxu0 0.0
        %393 = vmatpush1.msra.mxu0 0.0
        %394 = vmatprep.subr.mxu0 0.0
        %395 = vmatpush1.msra.mxu0 0.0
        %396 = vmatprep.subr.mxu0 %v367
        %397 = vmatpush1.msra.mxu0 %v366
        %398 = vmatprep.subr.mxu0 %v363
        %399 = vmatpush1.msra.mxu0 %v362
        %400 = vmatprep.subr.mxu0 %v359
        %401 = vmatpush1.msra.mxu0 %v358
        %402 = vmatprep.subr.mxu0 %v355
        %403 = vmatpush1.msra.mxu0 %v354
        %404 = vmatprep.subr.mxu0 %v351
        %405 = vmatpush1.msra.mxu0 %v350
        %406 = vmatprep.subr.mxu0 %v347
        %407 = vmatpush1.msra.mxu0 %v346
        %408 = vmatprep.subr.mxu0 %v343
        %409 = vmatpush1.msra.mxu0 %v342
        %410 = vmatprep.subr.mxu0 %v339
        %411 = vmatpush1.msra.mxu0 %v338
        %412 = vmatprep.subr.mxu0 0.0
        %413 = vmatpush2.msra.mxu0 0.0
        %414 = vmatprep.subr.mxu0 0.0
        %415 = vmatpush2.msra.mxu0 0.0
        %416 = vmatprep.subr.mxu0 0.0
        %417 = vmatpush2.msra.mxu0 0.0
        %418 = vmatprep.subr.mxu0 0.0
        %419 = vmatpush2.msra.mxu0 0.0
        %420 = vmatprep.subr.mxu0 0.0
        %421 = vmatpush2.msra.mxu0 0.0
        %422 = vmatprep.subr.mxu0 0.0
        %423 = vmatpush2.msra.mxu0 0.0
        %424 = vmatprep.subr.mxu0 0.0
        %425 = vmatpush2.msra.mxu0 0.0
        %426 = vmatprep.subr.mxu0 0.0
        %427 = vmatpush2.msra.mxu0 0.0
        %428 = vmatprep.subr.mxu0 0.0
        %429 = vmatpush2.msra.mxu0 0.0
        %430 = vmatprep.subr.mxu0 0.0
        %431 = vmatpush2.msra.mxu0 0.0
        %432 = vmatprep.subr.mxu0 0.0
        %433 = vmatpush2.msra.mxu0 0.0
        %434 = vmatprep.subr.mxu0 0.0
        %435 = vmatpush2.msra.mxu0 0.0
        %436 = vmatprep.subr.mxu0 0.0
        %437 = vmatpush2.msra.mxu0 0.0
        %438 = vmatprep.subr.mxu0 0.0
        %439 = vmatpush2.msra.mxu0 0.0
        %440 = vmatprep.subr.mxu0 0.0
        %441 = vmatpush2.msra.mxu0 0.0
        %442 = vmatprep.subr.mxu0 0.0
        %443 = vmatpush2.msra.mxu0 0.0
        %444 = vmatprep.mubr.f32.mxu0 0.0
        %445 = vmatmul.mubr.f32.gmra.mxu0 %v378
        %v446 = vpop.f32.mrf.mxu0
        %v447 = vadd.f32 %v374, %v446
        %v448 = vpop.f32.mrf.mxu0
        %v449 = vadd.f32 %v374, %v448
        %450 = vdwg.mxu0
        %451 = vmatprep.subr.mxu0 0.0
        %452 = vmatpush1.msra.mxu0 0.0
        %453 = vmatprep.subr.mxu0 0.0
        %454 = vmatpush1.msra.mxu0 0.0
        %455 = vmatprep.subr.mxu0 0.0
        %456 = vmatpush1.msra.mxu0 0.0
        %457 = vmatprep.subr.mxu0 0.0
        %458 = vmatpush1.msra.mxu0 0.0
        %459 = vmatprep.subr.mxu0 0.0
        %460 = vmatpush1.msra.mxu0 0.0
        %461 = vmatprep.subr.mxu0 0.0
        %462 = vmatpush1.msra.mxu0 0.0
        %463 = vmatprep.subr.mxu0 0.0
        %464 = vmatpush1.msra.mxu0 0.0
        %465 = vmatprep.subr.mxu0 0.0
        %466 = vmatpush1.msra.mxu0 0.0
        %467 = vmatprep.subr.mxu0 %v369
        %468 = vmatpush1.msra.mxu0 %v368
        %469 = vmatprep.subr.mxu0 %v365
        %470 = vmatpush1.msra.mxu0 %v364
        %471 = vmatprep.subr.mxu0 %v361
        %472 = vmatpush1.msra.mxu0 %v360
        %473 = vmatprep.subr.mxu0 %v357
        %474 = vmatpush1.msra.mxu0 %v356
        %475 = vmatprep.subr.mxu0 %v353
        %476 = vmatpush1.msra.mxu0 %v352
        %477 = vmatprep.subr.mxu0 %v349
        %478 = vmatpush1.msra.mxu0 %v348
        %479 = vmatprep.subr.mxu0 %v345
        %480 = vmatpush1.msra.mxu0 %v344
        %481 = vmatprep.subr.mxu0 %v341
        %482 = vmatpush1.msra.mxu0 %v340
        %483 = vmatprep.subr.mxu0 0.0
        %484 = vmatpush2.msra.mxu0 0.0
        %485 = vmatprep.subr.mxu0 0.0
        %486 = vmatpush2.msra.mxu0 0.0
        %487 = vmatprep.subr.mxu0 0.0
        %488 = vmatpush2.msra.mxu0 0.0
        %489 = vmatprep.subr.mxu0 0.0
        %490 = vmatpush2.msra.mxu0 0.0
        %491 = vmatprep.subr.mxu0 0.0
        %492 = vmatpush2.msra.mxu0 0.0
        %493 = vmatprep.subr.mxu0 0.0
        %494 = vmatpush2.msra.mxu0 0.0
        %495 = vmatprep.subr.mxu0 0.0
        %496 = vmatpush2.msra.mxu0 0.0
        %497 = vmatprep.subr.mxu0 0.0
        %498 = vmatpush2.msra.mxu0 0.0
        %499 = vmatprep.subr.mxu0 0.0
        %500 = vmatpush2.msra.mxu0 0.0
        %501 = vmatprep.subr.mxu0 0.0
        %502 = vmatpush2.msra.mxu0 0.0
        %503 = vmatprep.subr.mxu0 0.0
        %504 = vmatpush2.msra.mxu0 0.0
        %505 = vmatprep.subr.mxu0 0.0
        %506 = vmatpush2.msra.mxu0 0.0
        %507 = vmatprep.subr.mxu0 0.0
        %508 = vmatpush2.msra.mxu0 0.0
        %509 = vmatprep.subr.mxu0 0.0
        %510 = vmatpush2.msra.mxu0 0.0
        %511 = vmatprep.subr.mxu0 0.0
        %512 = vmatpush2.msra.mxu0 0.0
        %513 = vmatprep.subr.mxu0 0.0
        %514 = vmatpush2.msra.mxu0 0.0
        %515 = vmatprep.mubr.f32.mxu0 0.0
        %516 = vmatmul.mubr.f32.gmra.mxu0 %v378
        %v517 = vpop.f32.mrf.mxu0
        %v518 = vadd.f32 %v374, %v517
        %v519 = vpop.f32.mrf.mxu0
        %v520 = vadd.f32 %v374, %v519
        %521 = vdwg.mxu0
        %522 = vrot.lane.b32.xlu0 %v447, 68
        %v523 = vpop.permute.xlu0 %522
        %524 = vrot.lane.b32.xlu0 %v449, 68
        %v525 = vpop.permute.xlu0 %524
        %526 = vrot.lane.b32.xlu0 %v518, 68
        %v527 = vpop.permute.xlu0 %526
        %528 = vrot.lane.b32.xlu0 %v520, 68
        %v529 = vpop.permute.xlu0 %528
        %v530 = vlaneseq
        %v531 = vand.u32 %v530, 127
        %vm532 = vcmp.lt.s32.totalorder %v531, 68
        %v533 = vsel %vm532, %v527, %v529
        %v534 = vsel %vm532, %v525, %v527
        %v535 = vsel %vm532, %v523, %v525
        %v536 = vsel %vm532, %v529, %v523
        %v537 = vld [vmem:[%s1] sm:$0xff]
        %v538 = vld [vmem:[%s1 + $0x8] sm:$0xff]
        %v539 = vld [vmem:[%s1 + $0x10] sm:$0xff]
        %v540 = vld [vmem:[%s1 + $0x18] sm:$0xff]
        %v541 = vmul.f32 %v536, %v537
        %v542 = vmul.f32 %v535, %v538
        %v543 = vmul.f32 %v534, %v539
        %v544 = vmul.f32 %v533, %v540
        %545 = vst [vmem:[#allocation2] sm:$0xff] %v541
        %546 = vst [vmem:[#allocation2 + $0x8] sm:$0xff] %v542
        %547 = vst [vmem:[#allocation2 + $0x10] sm:$0xff] %v543
        %548 = vst [vmem:[#allocation2 + $0x18] sm:$0xff] %v544
        %549 = vrot.lane.b32.xlu0 %v447, 64
        %v550 = vpop.permute.xlu0 %549
        %551 = vrot.lane.b32.xlu0 %v449, 64
        %v552 = vpop.permute.xlu0 %551
        %553 = vrot.lane.b32.xlu0 %v518, 64
        %v554 = vpop.permute.xlu0 %553
        %555 = vrot.lane.b32.xlu0 %v520, 64
        %v556 = vpop.permute.xlu0 %555
        %vm557 = vcmp.lt.s32.totalorder %v531, 64
        %v558 = vsel %vm557, %v554, %v556
        %v559 = vsel %vm557, %v552, %v554
        %v560 = vsel %vm557, %v550, %v552
        %v561 = vsel %vm557, %v556, %v550
        %v562 = vld [vmem:[%s1 + $0x20] sm:$0xff]
        %v563 = vld [vmem:[%s1 + $0x28] sm:$0xff]
        %v564 = vld [vmem:[%s1 + $0x30] sm:$0xff]
        %v565 = vld [vmem:[%s1 + $0x38] sm:$0xff]
        %v566 = vmul.f32 %v561, %v562
        %v567 = vmul.f32 %v560, %v563
        %v568 = vmul.f32 %v559, %v564
        %v569 = vmul.f32 %v558, %v565
        %570 = vst [vmem:[#allocation2 + $0x20] sm:$0xff] %v566
        %571 = vst [vmem:[#allocation2 + $0x28] sm:$0xff] %v567
        %572 = vst [vmem:[#allocation2 + $0x30] sm:$0xff] %v568
        %573 = vst [vmem:[#allocation2 + $0x38] sm:$0xff] %v569
        %574 = vrot.lane.b32.xlu0 %v447, 60
        %v575 = vpop.permute.xlu0 %574
        %576 = vrot.lane.b32.xlu0 %v449, 60
        %v577 = vpop.permute.xlu0 %576
        %578 = vrot.lane.b32.xlu0 %v518, 60
        %v579 = vpop.permute.xlu0 %578
        %580 = vrot.lane.b32.xlu0 %v520, 60
        %v581 = vpop.permute.xlu0 %580
        %vm582 = vcmp.lt.s32.totalorder %v531, 60
        %v583 = vsel %vm582, %v579, %v581
        %v584 = vsel %vm582, %v577, %v579
        %v585 = vsel %vm582, %v575, %v577
        %v586 = vsel %vm582, %v581, %v575
        %v587 = vld [vmem:[%s1 + $0x40] sm:$0xff]
        %v588 = vld [vmem:[%s1 + $0x48] sm:$0xff]
        %v589 = vld [vmem:[%s1 + $0x50] sm:$0xff]
        %v590 = vld [vmem:[%s1 + $0x58] sm:$0xff]
        %v591 = vmul.f32 %v586, %v587
        %v592 = vmul.f32 %v585, %v588
        %v593 = vmul.f32 %v584, %v589
        %v594 = vmul.f32 %v583, %v590
        %595 = vst [vmem:[#allocation2 + $0x40] sm:$0xff] %v591
        %596 = vst [vmem:[#allocation2 + $0x48] sm:$0xff] %v592
        %597 = vst [vmem:[#allocation2 + $0x50] sm:$0xff] %v593
        %598 = vst [vmem:[#allocation2 + $0x58] sm:$0xff] %v594
        %599 = vrot.lane.b32.xlu0 %v447, 4
        %v600 = vpop.permute.xlu0 %599
        %601 = vrot.lane.b32.xlu0 %v449, 4
        %v602 = vpop.permute.xlu0 %601
        %603 = vrot.lane.b32.xlu0 %v518, 4
        %v604 = vpop.permute.xlu0 %603
        %605 = vrot.lane.b32.xlu0 %v520, 4
        %v606 = vpop.permute.xlu0 %605
        %vm607 = vcmp.lt.s32.totalorder %v531, 4
        %v608 = vsel %vm607, %v604, %v606
        %v609 = vsel %vm607, %v602, %v604
        %v610 = vsel %vm607, %v600, %v602
        %v611 = vsel %vm607, %v606, %v600
        %v612 = vld [vmem:[%s1 + $0x60] sm:$0xff]
        %v613 = vld [vmem:[%s1 + $0x68] sm:$0xff]
        %v614 = vld [vmem:[%s1 + $0x70] sm:$0xff]
        %v615 = vld [vmem:[%s1 + $0x78] sm:$0xff]
        %v616 = vmul.f32 %v611, %v612
        %v617 = vmul.f32 %v610, %v613
        %v618 = vmul.f32 %v609, %v614
        %v619 = vmul.f32 %v608, %v615
        %620 = vst [vmem:[#allocation2 + $0x60] sm:$0xff] %v616
        %621 = vst [vmem:[#allocation2 + $0x68] sm:$0xff] %v617
        %622 = vst [vmem:[#allocation2 + $0x70] sm:$0xff] %v618
        %623 = vst [vmem:[#allocation2 + $0x78] sm:$0xff] %v619
        %624 = vst [vmem:[#allocation2 + $0x80] sm:$0xff] %v447
        %625 = vst [vmem:[#allocation2 + $0x88] sm:$0xff] %v449
        %626 = vst [vmem:[#allocation2 + $0x90] sm:$0xff] %v518
        %627 = vst [vmem:[#allocation2 + $0x98] sm:$0xff] %v520
        %628 = vrot.lane.b32.xlu0 %v447, 124
        %v629 = vpop.permute.xlu0 %628
        %630 = vrot.lane.b32.xlu0 %v449, 124
        %v631 = vpop.permute.xlu0 %630
        %632 = vrot.lane.b32.xlu0 %v518, 124
        %v633 = vpop.permute.xlu0 %632
        %634 = vrot.lane.b32.xlu0 %v520, 124
        %v635 = vpop.permute.xlu0 %634
        %vm636 = vcmp.lt.s32.totalorder %v531, 124
        %v637 = vsel %vm636, %v633, %v635
        %v638 = vsel %vm636, %v631, %v633
        %v639 = vsel %vm636, %v629, %v631
        %v640 = vsel %vm636, %v635, %v629
        %v641 = vld [vmem:[%s1 + $0xa0] sm:$0xff]
        %v642 = vld [vmem:[%s1 + $0xa8] sm:$0xff]
        %v643 = vld [vmem:[%s1 + $0xb0] sm:$0xff]
        %v644 = vld [vmem:[%s1 + $0xb8] sm:$0xff]
        %v645 = vmul.f32 %v639, %v641
        %v646 = vmul.f32 %v638, %v642
        %v647 = vmul.f32 %v637, %v643
        %v648 = vmul.f32 %v640, %v644
        %649 = vst [vmem:[#allocation2 + $0xa0] sm:$0xff] %v645
        %650 = vst [vmem:[#allocation2 + $0xa8] sm:$0xff] %v646
        %651 = vst [vmem:[#allocation2 + $0xb0] sm:$0xff] %v647
        %652 = vst [vmem:[#allocation2 + $0xb8] sm:$0xff] %v648
        %v653 = vld [vmem:[%s1 + $0xc0] sm:$0xff]
        %v654 = vld [vmem:[%s1 + $0xc8] sm:$0xff]
        %v655 = vld [vmem:[%s1 + $0xd0] sm:$0xff]
        %v656 = vld [vmem:[%s1 + $0xd8] sm:$0xff]
        %v657 = vmul.f32 %v535, %v653
        %v658 = vmul.f32 %v534, %v654
        %v659 = vmul.f32 %v533, %v655
        %v660 = vmul.f32 %v536, %v656
        %661 = vst [vmem:[#allocation2 + $0xc0] sm:$0xff] %v657
        %662 = vst [vmem:[#allocation2 + $0xc8] sm:$0xff] %v658
        %663 = vst [vmem:[#allocation2 + $0xd0] sm:$0xff] %v659
        %664 = vst [vmem:[#allocation2 + $0xd8] sm:$0xff] %v660
        %v665 = vld [vmem:[%s1 + $0xe0] sm:$0xff]
        %v666 = vld [vmem:[%s1 + $0xe8] sm:$0xff]
        %v667 = vld [vmem:[%s1 + $0xf0] sm:$0xff]
        %v668 = vld [vmem:[%s1 + $0xf8] sm:$0xff]
        %v669 = vmul.f32 %v560, %v665
        %v670 = vmul.f32 %v559, %v666
        %v671 = vmul.f32 %v558, %v667
        %v672 = vmul.f32 %v561, %v668
        %673 = vst [vmem:[#allocation2 + $0xe0] sm:$0xff] %v669
        %674 = vst [vmem:[#allocation2 + $0xe8] sm:$0xff] %v670
        %675 = vst [vmem:[#allocation2 + $0xf0] sm:$0xff] %v671
        %676 = vst [vmem:[#allocation2 + $0xf8] sm:$0xff] %v672
        %v677 = vld [vmem:[%s1 + $0x100] sm:$0xff]
        %v678 = vld [vmem:[%s1 + $0x108] sm:$0xff]
        %v679 = vld [vmem:[%s1 + $0x110] sm:$0xff]
        %v680 = vld [vmem:[%s1 + $0x118] sm:$0xff]
        %v681 = vmul.f32 %v585, %v677
        %v682 = vmul.f32 %v584, %v678
        %v683 = vmul.f32 %v583, %v679
        %v684 = vmul.f32 %v586, %v680
        %685 = vst [vmem:[#allocation2 + $0x100] sm:$0xff] %v681
        %686 = vst [vmem:[#allocation2 + $0x108] sm:$0xff] %v682
        %687 = vst [vmem:[#allocation2 + $0x110] sm:$0xff] %v683
        %688 = vst [vmem:[#allocation2 + $0x118] sm:$0xff] %v684
        %v689 = vld [vmem:[#allocation6] sm:$0xff]
        %v690 = vld [vmem:[#allocation2] sm:$0xff]
        %v691 = vld [vmem:[#allocation2 + $0x8] sm:$0xff]
        %v692 = vld [vmem:[#allocation2 + $0x10] sm:$0xff]
        %v693 = vld [vmem:[#allocation2 + $0x18] sm:$0xff]
        %v694 = vld [vmem:[#allocation2 + $0x20] sm:$0xff]
        %v695 = vld [vmem:[#allocation2 + $0x28] sm:$0xff]
        %v696 = vld [vmem:[#allocation2 + $0x30] sm:$0xff]
        %v697 = vld [vmem:[#allocation2 + $0x38] sm:$0xff]
        %v698 = vld [vmem:[#allocation2 + $0x40] sm:$0xff]
        %v699 = vld [vmem:[#allocation2 + $0x48] sm:$0xff]
        %v700 = vld [vmem:[#allocation2 + $0x50] sm:$0xff]
        %v701 = vld [vmem:[#allocation2 + $0x58] sm:$0xff]
        %v702 = vld [vmem:[#allocation2 + $0x60] sm:$0xff]
        %v703 = vld [vmem:[#allocation2 + $0x68] sm:$0xff]
        %v704 = vld [vmem:[#allocation2 + $0x70] sm:$0xff]
        %v705 = vld [vmem:[#allocation2 + $0x78] sm:$0xff]
        %v706 = vld [vmem:[#allocation2 + $0x80] sm:$0xff]
        %v707 = vld [vmem:[#allocation2 + $0x88] sm:$0xff]
        %v708 = vld [vmem:[#allocation2 + $0x90] sm:$0xff]
        %v709 = vld [vmem:[#allocation2 + $0x98] sm:$0xff]
        %v710 = vld [vmem:[#allocation2 + $0xa0] sm:$0xff]
        %v711 = vld [vmem:[#allocation2 + $0xa8] sm:$0xff]
        %v712 = vld [vmem:[#allocation2 + $0xb0] sm:$0xff]
        %v713 = vld [vmem:[#allocation2 + $0xb8] sm:$0xff]
        %v714 = vld [vmem:[#allocation2 + $0xc0] sm:$0xff]
        %v715 = vld [vmem:[#allocation2 + $0xc8] sm:$0xff]
        %v716 = vld [vmem:[#allocation2 + $0xd0] sm:$0xff]
        %v717 = vld [vmem:[#allocation2 + $0xd8] sm:$0xff]
        %v718 = vld [vmem:[#allocation2 + $0xe0] sm:$0xff]
        %v719 = vld [vmem:[#allocation2 + $0xe8] sm:$0xff]
        %v720 = vld [vmem:[#allocation2 + $0xf0] sm:$0xff]
        %v721 = vld [vmem:[#allocation2 + $0xf8] sm:$0xff]
        %v722 = vld [vmem:[#allocation2 + $0x100] sm:$0xff]
        %v723 = vld [vmem:[#allocation2 + $0x108] sm:$0xff]
        %v724 = vld [vmem:[#allocation2 + $0x110] sm:$0xff]
        %v725 = vld [vmem:[#allocation2 + $0x118] sm:$0xff]
        %s726 = scalar_lea.vmem %s5, 8
        %v727 = vld [vmem:[%s726] sm:$0xff]
        %729 = vset.pattern.permute.xlu0 0
        %730 = vperm.xlu0 %729, %v727
        %v731 = vpop.permute.xlu0 %730
        %vm733 = vcmask 588800
        %v735 = vsel %vm733, %v689, 0
        %737 = vmatprep.subr.mxu0 0.0
        %738 = vmatpush1.msra.mxu0 0.0
        %739 = vmatprep.subr.mxu0 0.0
        %740 = vmatpush1.msra.mxu0 0.0
        %741 = vmatprep.subr.mxu0 0.0
        %742 = vmatpush1.msra.mxu0 0.0
        %743 = vmatprep.subr.mxu0 0.0
        %744 = vmatpush1.msra.mxu0 0.0
        %745 = vmatprep.subr.mxu0 0.0
        %746 = vmatpush1.msra.mxu0 0.0
        %747 = vmatprep.subr.mxu0 0.0
        %748 = vmatpush1.msra.mxu0 0.0
        %749 = vmatprep.subr.mxu0 0.0
        %750 = vmatpush1.msra.mxu0 0.0
        %751 = vmatprep.subr.mxu0 %v723
        %752 = vmatpush1.msra.mxu0 %v722
        %753 = vmatprep.subr.mxu0 %v719
        %754 = vmatpush1.msra.mxu0 %v718
        %755 = vmatprep.subr.mxu0 %v715
        %756 = vmatpush1.msra.mxu0 %v714
        %757 = vmatprep.subr.mxu0 %v711
        %758 = vmatpush1.msra.mxu0 %v710
        %759 = vmatprep.subr.mxu0 %v707
        %760 = vmatpush1.msra.mxu0 %v706
        %761 = vmatprep.subr.mxu0 %v703
        %762 = vmatpush1.msra.mxu0 %v702
        %763 = vmatprep.subr.mxu0 %v699
        %764 = vmatpush1.msra.mxu0 %v698
        %765 = vmatprep.subr.mxu0 %v695
        %766 = vmatpush1.msra.mxu0 %v694
        %767 = vmatprep.subr.mxu0 %v691
        %768 = vmatpush1.msra.mxu0 %v690
        %769 = vmatprep.subr.mxu0 0.0
        %770 = vmatpush2.msra.mxu0 0.0
        %771 = vmatprep.subr.mxu0 0.0
        %772 = vmatpush2.msra.mxu0 0.0
        %773 = vmatprep.subr.mxu0 0.0
        %774 = vmatpush2.msra.mxu0 0.0
        %775 = vmatprep.subr.mxu0 0.0
        %776 = vmatpush2.msra.mxu0 0.0
        %777 = vmatprep.subr.mxu0 0.0
        %778 = vmatpush2.msra.mxu0 0.0
        %779 = vmatprep.subr.mxu0 0.0
        %780 = vmatpush2.msra.mxu0 0.0
        %781 = vmatprep.subr.mxu0 0.0
        %782 = vmatpush2.msra.mxu0 0.0
        %783 = vmatprep.subr.mxu0 0.0
        %784 = vmatpush2.msra.mxu0 0.0
        %785 = vmatprep.subr.mxu0 0.0
        %786 = vmatpush2.msra.mxu0 0.0
        %787 = vmatprep.subr.mxu0 0.0
        %788 = vmatpush2.msra.mxu0 0.0
        %789 = vmatprep.subr.mxu0 0.0
        %790 = vmatpush2.msra.mxu0 0.0
        %791 = vmatprep.subr.mxu0 0.0
        %792 = vmatpush2.msra.mxu0 0.0
        %793 = vmatprep.subr.mxu0 0.0
        %794 = vmatpush2.msra.mxu0 0.0
        %795 = vmatprep.subr.mxu0 0.0
        %796 = vmatpush2.msra.mxu0 0.0
        %797 = vmatprep.subr.mxu0 0.0
        %798 = vmatpush2.msra.mxu0 0.0
        %799 = vmatprep.subr.mxu0 0.0
        %800 = vmatpush2.msra.mxu0 0.0
        %801 = vmatprep.mubr.f32.mxu0 0.0
        %802 = vmatmul.mubr.f32.gmra.mxu0 %v735
        %v803 = vpop.f32.mrf.mxu0
        %v804 = vadd.f32 %v731, %v803
        %v805 = vpop.f32.mrf.mxu0
        %v806 = vadd.f32 %v731, %v805
        %807 = vdwg.mxu0
        %808 = vmatprep.subr.mxu0 0.0
        %809 = vmatpush1.msra.mxu0 0.0
        %810 = vmatprep.subr.mxu0 0.0
        %811 = vmatpush1.msra.mxu0 0.0
        %812 = vmatprep.subr.mxu0 0.0
        %813 = vmatpush1.msra.mxu0 0.0
        %814 = vmatprep.subr.mxu0 0.0
        %815 = vmatpush1.msra.mxu0 0.0
        %816 = vmatprep.subr.mxu0 0.0
        %817 = vmatpush1.msra.mxu0 0.0
        %818 = vmatprep.subr.mxu0 0.0
        %819 = vmatpush1.msra.mxu0 0.0
        %820 = vmatprep.subr.mxu0 0.0
        %821 = vmatpush1.msra.mxu0 0.0
        %822 = vmatprep.subr.mxu0 %v725
        %823 = vmatpush1.msra.mxu0 %v724
        %824 = vmatprep.subr.mxu0 %v721
        %825 = vmatpush1.msra.mxu0 %v720
        %826 = vmatprep.subr.mxu0 %v717
        %827 = vmatpush1.msra.mxu0 %v716
        %828 = vmatprep.subr.mxu0 %v713
        %829 = vmatpush1.msra.mxu0 %v712
        %830 = vmatprep.subr.mxu0 %v709
        %831 = vmatpush1.msra.mxu0 %v708
        %832 = vmatprep.subr.mxu0 %v705
        %833 = vmatpush1.msra.mxu0 %v704
        %834 = vmatprep.subr.mxu0 %v701
        %835 = vmatpush1.msra.mxu0 %v700
        %836 = vmatprep.subr.mxu0 %v697
        %837 = vmatpush1.msra.mxu0 %v696
        %838 = vmatprep.subr.mxu0 %v693
        %839 = vmatpush1.msra.mxu0 %v692
        %840 = vmatprep.subr.mxu0 0.0
        %841 = vmatpush2.msra.mxu0 0.0
        %842 = vmatprep.subr.mxu0 0.0
        %843 = vmatpush2.msra.mxu0 0.0
        %844 = vmatprep.subr.mxu0 0.0
        %845 = vmatpush2.msra.mxu0 0.0
        %846 = vmatprep.subr.mxu0 0.0
        %847 = vmatpush2.msra.mxu0 0.0
        %848 = vmatprep.subr.mxu0 0.0
        %849 = vmatpush2.msra.mxu0 0.0
        %850 = vmatprep.subr.mxu0 0.0
        %851 = vmatpush2.msra.mxu0 0.0
        %852 = vmatprep.subr.mxu0 0.0
        %853 = vmatpush2.msra.mxu0 0.0
        %854 = vmatprep.subr.mxu0 0.0
        %855 = vmatpush2.msra.mxu0 0.0
        %856 = vmatprep.subr.mxu0 0.0
        %857 = vmatpush2.msra.mxu0 0.0
        %858 = vmatprep.subr.mxu0 0.0
        %859 = vmatpush2.msra.mxu0 0.0
        %860 = vmatprep.subr.mxu0 0.0
        %861 = vmatpush2.msra.mxu0 0.0
        %862 = vmatprep.subr.mxu0 0.0
        %863 = vmatpush2.msra.mxu0 0.0
        %864 = vmatprep.subr.mxu0 0.0
        %865 = vmatpush2.msra.mxu0 0.0
        %866 = vmatprep.subr.mxu0 0.0
        %867 = vmatpush2.msra.mxu0 0.0
        %868 = vmatprep.subr.mxu0 0.0
        %869 = vmatpush2.msra.mxu0 0.0
        %870 = vmatprep.subr.mxu0 0.0
        %871 = vmatpush2.msra.mxu0 0.0
        %872 = vmatprep.mubr.f32.mxu0 0.0
        %873 = vmatmul.mubr.f32.gmra.mxu0 %v735
        %v874 = vpop.f32.mrf.mxu0
        %v875 = vadd.f32 %v731, %v874
        %v876 = vpop.f32.mrf.mxu0
        %v877 = vadd.f32 %v731, %v876
        %878 = vdwg.mxu0
        %879 = vrot.lane.b32.xlu0 %v804, 68
        %v880 = vpop.permute.xlu0 %879
        %881 = vrot.lane.b32.xlu0 %v806, 68
        %v882 = vpop.permute.xlu0 %881
        %883 = vrot.lane.b32.xlu0 %v875, 68
        %v884 = vpop.permute.xlu0 %883
        %885 = vrot.lane.b32.xlu0 %v877, 68
        %v886 = vpop.permute.xlu0 %885
        %v887 = vsel %vm532, %v884, %v886
        %v888 = vsel %vm532, %v882, %v884
        %v889 = vsel %vm532, %v880, %v882
        %v890 = vsel %vm532, %v886, %v880
        %v891 = vld [vmem:[%s1] sm:$0xff]
        %v892 = vld [vmem:[%s1 + $0x8] sm:$0xff]
        %v893 = vld [vmem:[%s1 + $0x10] sm:$0xff]
        %v894 = vld [vmem:[%s1 + $0x18] sm:$0xff]
        %v895 = vmul.f32 %v890, %v891
        %v896 = vmul.f32 %v889, %v892
        %v897 = vmul.f32 %v888, %v893
        %v898 = vmul.f32 %v887, %v894
        %899 = vst [vmem:[#allocation2] sm:$0xff] %v895
        %900 = vst [vmem:[#allocation2 + $0x8] sm:$0xff] %v896
        %901 = vst [vmem:[#allocation2 + $0x10] sm:$0xff] %v897
        %902 = vst [vmem:[#allocation2 + $0x18] sm:$0xff] %v898
        %903 = vrot.lane.b32.xlu0 %v804, 64
        %v904 = vpop.permute.xlu0 %903
        %905 = vrot.lane.b32.xlu0 %v806, 64
        %v906 = vpop.permute.xlu0 %905
        %907 = vrot.lane.b32.xlu0 %v875, 64
        %v908 = vpop.permute.xlu0 %907
        %909 = vrot.lane.b32.xlu0 %v877, 64
        %v910 = vpop.permute.xlu0 %909
        %v911 = vsel %vm557, %v908, %v910
        %v912 = vsel %vm557, %v906, %v908
        %v913 = vsel %vm557, %v904, %v906
        %v914 = vsel %vm557, %v910, %v904
        %v915 = vld [vmem:[%s1 + $0x20] sm:$0xff]
        %v916 = vld [vmem:[%s1 + $0x28] sm:$0xff]
        %v917 = vld [vmem:[%s1 + $0x30] sm:$0xff]
        %v918 = vld [vmem:[%s1 + $0x38] sm:$0xff]
        %v919 = vmul.f32 %v914, %v915
        %v920 = vmul.f32 %v913, %v916
        %v921 = vmul.f32 %v912, %v917
        %v922 = vmul.f32 %v911, %v918
        %923 = vst [vmem:[#allocation2 + $0x20] sm:$0xff] %v919
        %924 = vst [vmem:[#allocation2 + $0x28] sm:$0xff] %v920
        %925 = vst [vmem:[#allocation2 + $0x30] sm:$0xff] %v921
        %926 = vst [vmem:[#allocation2 + $0x38] sm:$0xff] %v922
        %927 = vrot.lane.b32.xlu0 %v804, 60
        %v928 = vpop.permute.xlu0 %927
        %929 = vrot.lane.b32.xlu0 %v806, 60
        %v930 = vpop.permute.xlu0 %929
        %931 = vrot.lane.b32.xlu0 %v875, 60
        %v932 = vpop.permute.xlu0 %931
        %933 = vrot.lane.b32.xlu0 %v877, 60
        %v934 = vpop.permute.xlu0 %933
        %v935 = vsel %vm582, %v932, %v934
        %v936 = vsel %vm582, %v930, %v932
        %v937 = vsel %vm582, %v928, %v930
        %v938 = vsel %vm582, %v934, %v928
        %v939 = vld [vmem:[%s1 + $0x40] sm:$0xff]
        %v940 = vld [vmem:[%s1 + $0x48] sm:$0xff]
        %v941 = vld [vmem:[%s1 + $0x50] sm:$0xff]
        %v942 = vld [vmem:[%s1 + $0x58] sm:$0xff]
        %v943 = vmul.f32 %v938, %v939
        %v944 = vmul.f32 %v937, %v940
        %v945 = vmul.f32 %v936, %v941
        %v946 = vmul.f32 %v935, %v942
        %947 = vst [vmem:[#allocation2 + $0x40] sm:$0xff] %v943
        %948 = vst [vmem:[#allocation2 + $0x48] sm:$0xff] %v944
        %949 = vst [vmem:[#allocation2 + $0x50] sm:$0xff] %v945
        %950 = vst [vmem:[#allocation2 + $0x58] sm:$0xff] %v946
        %951 = vrot.lane.b32.xlu0 %v804, 4
        %v952 = vpop.permute.xlu0 %951
        %953 = vrot.lane.b32.xlu0 %v806, 4
        %v954 = vpop.permute.xlu0 %953
        %955 = vrot.lane.b32.xlu0 %v875, 4
        %v956 = vpop.permute.xlu0 %955
        %957 = vrot.lane.b32.xlu0 %v877, 4
        %v958 = vpop.permute.xlu0 %957
        %v959 = vsel %vm607, %v956, %v958
        %v960 = vsel %vm607, %v954, %v956
        %v961 = vsel %vm607, %v952, %v954
        %v962 = vsel %vm607, %v958, %v952
        %v963 = vld [vmem:[%s1 + $0x60] sm:$0xff]
        %v964 = vld [vmem:[%s1 + $0x68] sm:$0xff]
        %v965 = vld [vmem:[%s1 + $0x70] sm:$0xff]
        %v966 = vld [vmem:[%s1 + $0x78] sm:$0xff]
        %v967 = vmul.f32 %v962, %v963
        %v968 = vmul.f32 %v961, %v964
        %v969 = vmul.f32 %v960, %v965
        %v970 = vmul.f32 %v959, %v966
        %971 = vst [vmem:[#allocation2 + $0x60] sm:$0xff] %v967
        %972 = vst [vmem:[#allocation2 + $0x68] sm:$0xff] %v968
        %973 = vst [vmem:[#allocation2 + $0x70] sm:$0xff] %v969
        %974 = vst [vmem:[#allocation2 + $0x78] sm:$0xff] %v970
        %975 = vst [vmem:[#allocation2 + $0x80] sm:$0xff] %v804
        %976 = vst [vmem:[#allocation2 + $0x88] sm:$0xff] %v806
        %977 = vst [vmem:[#allocation2 + $0x90] sm:$0xff] %v875
        %978 = vst [vmem:[#allocation2 + $0x98] sm:$0xff] %v877
        %979 = vrot.lane.b32.xlu0 %v804, 124
        %v980 = vpop.permute.xlu0 %979
        %981 = vrot.lane.b32.xlu0 %v806, 124
        %v982 = vpop.permute.xlu0 %981
        %983 = vrot.lane.b32.xlu0 %v875, 124
        %v984 = vpop.permute.xlu0 %983
        %985 = vrot.lane.b32.xlu0 %v877, 124
        %v986 = vpop.permute.xlu0 %985
        %v987 = vsel %vm636, %v984, %v986
        %v988 = vsel %vm636, %v982, %v984
        %v989 = vsel %vm636, %v980, %v982
        %v990 = vsel %vm636, %v986, %v980
        %v991 = vld [vmem:[%s1 + $0xa0] sm:$0xff]
        %v992 = vld [vmem:[%s1 + $0xa8] sm:$0xff]
        %v993 = vld [vmem:[%s1 + $0xb0] sm:$0xff]
        %v994 = vld [vmem:[%s1 + $0xb8] sm:$0xff]
        %v995 = vmul.f32 %v989, %v991
        %v996 = vmul.f32 %v988, %v992
        %v997 = vmul.f32 %v987, %v993
        %v998 = vmul.f32 %v990, %v994
        %999 = vst [vmem:[#allocation2 + $0xa0] sm:$0xff] %v995
        %1000 = vst [vmem:[#allocation2 + $0xa8] sm:$0xff] %v996
        %1001 = vst [vmem:[#allocation2 + $0xb0] sm:$0xff] %v997
        %1002 = vst [vmem:[#allocation2 + $0xb8] sm:$0xff] %v998
        %v1003 = vld [vmem:[%s1 + $0xc0] sm:$0xff]
        %v1004 = vld [vmem:[%s1 + $0xc8] sm:$0xff]
        %v1005 = vld [vmem:[%s1 + $0xd0] sm:$0xff]
        %v1006 = vld [vmem:[%s1 + $0xd8] sm:$0xff]
        %v1007 = vmul.f32 %v889, %v1003
        %v1008 = vmul.f32 %v888, %v1004
        %v1009 = vmul.f32 %v887, %v1005
        %v1010 = vmul.f32 %v890, %v1006
        %1011 = vst [vmem:[#allocation2 + $0xc0] sm:$0xff] %v1007
        %1012 = vst [vmem:[#allocation2 + $0xc8] sm:$0xff] %v1008
        %1013 = vst [vmem:[#allocation2 + $0xd0] sm:$0xff] %v1009
        %1014 = vst [vmem:[#allocation2 + $0xd8] sm:$0xff] %v1010
        %v1015 = vld [vmem:[%s1 + $0xe0] sm:$0xff]
        %v1016 = vld [vmem:[%s1 + $0xe8] sm:$0xff]
        %v1017 = vld [vmem:[%s1 + $0xf0] sm:$0xff]
        %v1018 = vld [vmem:[%s1 + $0xf8] sm:$0xff]
        %v1019 = vmul.f32 %v913, %v1015
        %v1020 = vmul.f32 %v912, %v1016
        %v1021 = vmul.f32 %v911, %v1017
        %v1022 = vmul.f32 %v914, %v1018
        %1023 = vst [vmem:[#allocation2 + $0xe0] sm:$0xff] %v1019
        %1024 = vst [vmem:[#allocation2 + $0xe8] sm:$0xff] %v1020
        %1025 = vst [vmem:[#allocation2 + $0xf0] sm:$0xff] %v1021
        %1026 = vst [vmem:[#allocation2 + $0xf8] sm:$0xff] %v1022
        %v1027 = vld [vmem:[%s1 + $0x100] sm:$0xff]
        %v1028 = vld [vmem:[%s1 + $0x108] sm:$0xff]
        %v1029 = vld [vmem:[%s1 + $0x110] sm:$0xff]
        %v1030 = vld [vmem:[%s1 + $0x118] sm:$0xff]
        %v1031 = vmul.f32 %v937, %v1027
        %v1032 = vmul.f32 %v936, %v1028
        %v1033 = vmul.f32 %v935, %v1029
        %v1034 = vmul.f32 %v938, %v1030
        %1035 = vst [vmem:[#allocation2 + $0x100] sm:$0xff] %v1031
        %1036 = vst [vmem:[#allocation2 + $0x108] sm:$0xff] %v1032
        %1037 = vst [vmem:[#allocation2 + $0x110] sm:$0xff] %v1033
        %1038 = vst [vmem:[#allocation2 + $0x118] sm:$0xff] %v1034
        %v1039 = vld [vmem:[%s7] sm:$0xff]
        %v1040 = vld [vmem:[%s7 + $0x8] sm:$0xff]
        %v1041 = vld [vmem:[%s7 + $0x10] sm:$0xff]
        %v1042 = vld [vmem:[%s7 + $0x18] sm:$0xff]
        %v1043 = vld [vmem:[%s7 + $0x20] sm:$0xff]
        %v1044 = vld [vmem:[%s7 + $0x28] sm:$0xff]
        %v1045 = vld [vmem:[%s7 + $0x30] sm:$0xff]
        %v1046 = vld [vmem:[%s7 + $0x38] sm:$0xff]
        %v1047 = vld [vmem:[%s7 + $0x40] sm:$0xff]
        %v1048 = vld [vmem:[#allocation2] sm:$0xff]
        %v1049 = vld [vmem:[#allocation2 + $0x8] sm:$0xff]
        %v1050 = vld [vmem:[#allocation2 + $0x10] sm:$0xff]
        %v1051 = vld [vmem:[#allocation2 + $0x18] sm:$0xff]
        %v1052 = vld [vmem:[#allocation2 + $0x20] sm:$0xff]
        %v1053 = vld [vmem:[#allocation2 + $0x28] sm:$0xff]
        %v1054 = vld [vmem:[#allocation2 + $0x30] sm:$0xff]
        %v1055 = vld [vmem:[#allocation2 + $0x38] sm:$0xff]
        %v1056 = vld [vmem:[#allocation2 + $0x40] sm:$0xff]
        %v1057 = vld [vmem:[#allocation2 + $0x48] sm:$0xff]
        %v1058 = vld [vmem:[#allocation2 + $0x50] sm:$0xff]
        %v1059 = vld [vmem:[#allocation2 + $0x58] sm:$0xff]
        %v1060 = vld [vmem:[#allocation2 + $0x60] sm:$0xff]
        %v1061 = vld [vmem:[#allocation2 + $0x68] sm:$0xff]
        %v1062 = vld [vmem:[#allocation2 + $0x70] sm:$0xff]
        %v1063 = vld [vmem:[#allocation2 + $0x78] sm:$0xff]
        %v1064 = vld [vmem:[#allocation2 + $0x80] sm:$0xff]
        %v1065 = vld [vmem:[#allocation2 + $0x88] sm:$0xff]
        %v1066 = vld [vmem:[#allocation2 + $0x90] sm:$0xff]
        %v1067 = vld [vmem:[#allocation2 + $0x98] sm:$0xff]
        %v1068 = vld [vmem:[#allocation2 + $0xa0] sm:$0xff]
        %v1069 = vld [vmem:[#allocation2 + $0xa8] sm:$0xff]
        %v1070 = vld [vmem:[#allocation2 + $0xb0] sm:$0xff]
        %v1071 = vld [vmem:[#allocation2 + $0xb8] sm:$0xff]
        %v1072 = vld [vmem:[#allocation2 + $0xc0] sm:$0xff]
        %v1073 = vld [vmem:[#allocation2 + $0xc8] sm:$0xff]
        %v1074 = vld [vmem:[#allocation2 + $0xd0] sm:$0xff]
        %v1075 = vld [vmem:[#allocation2 + $0xd8] sm:$0xff]
        %v1076 = vld [vmem:[#allocation2 + $0xe0] sm:$0xff]
        %v1077 = vld [vmem:[#allocation2 + $0xe8] sm:$0xff]
        %v1078 = vld [vmem:[#allocation2 + $0xf0] sm:$0xff]
        %v1079 = vld [vmem:[#allocation2 + $0xf8] sm:$0xff]
        %v1080 = vld [vmem:[#allocation2 + $0x100] sm:$0xff]
        %v1081 = vld [vmem:[#allocation2 + $0x108] sm:$0xff]
        %v1082 = vld [vmem:[#allocation2 + $0x110] sm:$0xff]
        %v1083 = vld [vmem:[#allocation2 + $0x118] sm:$0xff]
        %1085 = vset.pattern.permute.xlu0 0
        %1086 = vperm.xlu0 %1085, %v1039
        %v1087 = vpop.permute.xlu0 %1086
        %1090 = vset.pattern.permute.xlu0 0
        %1091 = vperm.xlu0 %1090, %v1040
        %v1092 = vpop.permute.xlu0 %1091
        %1095 = vset.pattern.permute.xlu0 0
        %1096 = vperm.xlu0 %1095, %v1041
        %v1097 = vpop.permute.xlu0 %1096
        %1100 = vset.pattern.permute.xlu0 0
        %1101 = vperm.xlu0 %1100, %v1042
        %v1102 = vpop.permute.xlu0 %1101
        %1105 = vset.pattern.permute.xlu0 0
        %1106 = vperm.xlu0 %1105, %v1043
        %v1107 = vpop.permute.xlu0 %1106
        %1110 = vset.pattern.permute.xlu0 0
        %1111 = vperm.xlu0 %1110, %v1044
        %v1112 = vpop.permute.xlu0 %1111
        %1115 = vset.pattern.permute.xlu0 0
        %1116 = vperm.xlu0 %1115, %v1045
        %v1117 = vpop.permute.xlu0 %1116
        %1120 = vset.pattern.permute.xlu0 0
        %1121 = vperm.xlu0 %1120, %v1046
        %v1122 = vpop.permute.xlu0 %1121
        %1125 = vset.pattern.permute.xlu0 0
        %1126 = vperm.xlu0 %1125, %v1047
        %v1127 = vpop.permute.xlu0 %1126
        %v1129 = vmul.f32 %v1087, %v1048
        %v1130 = vmul.f32 %v1087, %v1049
        %v1131 = vmul.f32 %v1087, %v1050
        %v1132 = vmul.f32 %v1087, %v1051
        %v1133 = vmul.f32 %v1092, %v1052
        %v1134 = vmul.f32 %v1092, %v1053
        %v1135 = vmul.f32 %v1092, %v1054
        %v1136 = vmul.f32 %v1092, %v1055
        %v1137 = vmul.f32 %v1097, %v1056
        %v1138 = vmul.f32 %v1097, %v1057
        %v1139 = vmul.f32 %v1097, %v1058
        %v1140 = vmul.f32 %v1097, %v1059
        %v1141 = vmul.f32 %v1102, %v1060
        %v1142 = vmul.f32 %v1102, %v1061
        %v1143 = vmul.f32 %v1102, %v1062
        %v1144 = vmul.f32 %v1102, %v1063
        %v1145 = vmul.f32 %v1107, %v1064
        %v1146 = vmul.f32 %v1107, %v1065
        %v1147 = vmul.f32 %v1107, %v1066
        %v1148 = vmul.f32 %v1107, %v1067
        %v1149 = vmul.f32 %v1112, %v1068
        %v1150 = vmul.f32 %v1112, %v1069
        %v1151 = vmul.f32 %v1112, %v1070
        %v1152 = vmul.f32 %v1112, %v1071
        %v1153 = vmul.f32 %v1117, %v1072
        %v1154 = vmul.f32 %v1117, %v1073
        %v1155 = vmul.f32 %v1117, %v1074
        %v1156 = vmul.f32 %v1117, %v1075
        %v1157 = vmul.f32 %v1122, %v1076
        %v1158 = vmul.f32 %v1122, %v1077
        %v1159 = vmul.f32 %v1122, %v1078
        %v1160 = vmul.f32 %v1122, %v1079
        %v1161 = vmul.f32 %v1127, %v1080
        %v1162 = vmul.f32 %v1127, %v1081
        %v1163 = vmul.f32 %v1127, %v1082
        %v1164 = vmul.f32 %v1127, %v1083
        %v1165 = vadd.f32 %v1129, %v1133
        %v1166 = vadd.f32 %v1165, %v1137
        %v1167 = vadd.f32 %v1166, %v1141
        %v1168 = vadd.f32 %v1167, %v1145
        %v1169 = vadd.f32 %v1168, %v1149
        %v1170 = vadd.f32 %v1169, %v1153
        %v1171 = vadd.f32 %v1170, %v1157
        %v1172 = vadd.f32 %v1171, %v1161
        %v1173 = vrot.slane %v1172, 4
        %v1174 = vadd.f32 %v1172, %v1173
        %v1175 = vrot.slane %v1174, 2
        %v1176 = vadd.f32 %v1174, %v1175
        %v1177 = vrot.slane %v1176, 1
        %v1178 = vadd.f32 %v1176, %v1177
        %v1179 = vadd.f32 %v1130, %v1134
        %v1180 = vadd.f32 %v1179, %v1138
        %v1181 = vadd.f32 %v1180, %v1142
        %v1182 = vadd.f32 %v1181, %v1146
        %v1183 = vadd.f32 %v1182, %v1150
        %v1184 = vadd.f32 %v1183, %v1154
        %v1185 = vadd.f32 %v1184, %v1158
        %v1186 = vadd.f32 %v1185, %v1162
        %v1187 = vrot.slane %v1186, 4
        %v1188 = vadd.f32 %v1186, %v1187
        %v1189 = vrot.slane %v1188, 2
        %v1190 = vadd.f32 %v1188, %v1189
        %v1191 = vrot.slane %v1190, 1
        %v1192 = vadd.f32 %v1190, %v1191
        %v1193 = vadd.f32 %v1131, %v1135
        %v1194 = vadd.f32 %v1193, %v1139
        %v1195 = vadd.f32 %v1194, %v1143
        %v1196 = vadd.f32 %v1195, %v1147
        %v1197 = vadd.f32 %v1196, %v1151
        %v1198 = vadd.f32 %v1197, %v1155
        %v1199 = vadd.f32 %v1198, %v1159
        %v1200 = vadd.f32 %v1199, %v1163
        %v1201 = vrot.slane %v1200, 4
        %v1202 = vadd.f32 %v1200, %v1201
        %v1203 = vrot.slane %v1202, 2
        %v1204 = vadd.f32 %v1202, %v1203
        %v1205 = vrot.slane %v1204, 1
        %v1206 = vadd.f32 %v1204, %v1205
        %v1207 = vadd.f32 %v1132, %v1136
        %v1208 = vadd.f32 %v1207, %v1140
        %v1209 = vadd.f32 %v1208, %v1144
        %v1210 = vadd.f32 %v1209, %v1148
        %v1211 = vadd.f32 %v1210, %v1152
        %v1212 = vadd.f32 %v1211, %v1156
        %v1213 = vadd.f32 %v1212, %v1160
        %v1214 = vadd.f32 %v1213, %v1164
        %v1215 = vrot.slane %v1214, 4
        %v1216 = vadd.f32 %v1214, %v1215
        %v1217 = vrot.slane %v1216, 2
        %v1218 = vadd.f32 %v1216, %v1217
        %v1219 = vrot.slane %v1218, 1
        %v1220 = vadd.f32 %v1218, %v1219
        %v1221 = vld [vmem:[%s2] sm:$0xff]
        %v1222 = vld [vmem:[%s2 + $0x8] sm:$0xff]
        %v1223 = vld [vmem:[%s2 + $0x10] sm:$0xff]
        %v1224 = vld [vmem:[%s2 + $0x18] sm:$0xff]
        %v1225 = vld [vmem:[%s2 + $0x20] sm:$0xff]
        %v1226 = vld [vmem:[%s2 + $0x28] sm:$0xff]
        %v1227 = vld [vmem:[%s2 + $0x30] sm:$0xff]
        %v1228 = vld [vmem:[%s2 + $0x38] sm:$0xff]
        %s1229 = scalar_lea.vmem %s2, 64
        %v1230 = vld [vmem:[%s1229] sm:$0xff]
        %v1231 = vld [vmem:[%s1229 + $0x8] sm:$0xff]
        %v1232 = vld [vmem:[%s1229 + $0x10] sm:$0xff]
        %v1233 = vld [vmem:[%s1229 + $0x18] sm:$0xff]
        %v1234 = vld [vmem:[%s1229 + $0x20] sm:$0xff]
        %v1235 = vld [vmem:[%s1229 + $0x28] sm:$0xff]
        %v1236 = vld [vmem:[%s1229 + $0x30] sm:$0xff]
        %v1237 = vld [vmem:[%s1229 + $0x38] sm:$0xff]
        %v1238 = vld [vmem:[%s3] sm:$0xff]
        %v1239 = vld [vmem:[%s3 + $0x8] sm:$0xff]
        %v1240 = vld [vmem:[%s3 + $0x10] sm:$0xff]
        %v1241 = vld [vmem:[%s3 + $0x18] sm:$0xff]
        %v1242 = vld [vmem:[%s3 + $0x20] sm:$0xff]
        %v1243 = vld [vmem:[%s3 + $0x28] sm:$0xff]
        %v1244 = vld [vmem:[%s3 + $0x30] sm:$0xff]
        %v1245 = vld [vmem:[%s3 + $0x38] sm:$0xff]
        %v1246 = vld [vmem:[%s300] sm:$0xff]
        %v1247 = vld [vmem:[%s300 + $0x8] sm:$0xff]
        %v1248 = vld [vmem:[%s300 + $0x20] sm:$0xff]
        %v1249 = vld [vmem:[%s300 + $0x28] sm:$0xff]
        %v1250 = vld [vmem:[%s300 + $0x40] sm:$0xff]
        %v1251 = vld [vmem:[%s300 + $0x48] sm:$0xff]
        %v1252 = vld [vmem:[%s300 + $0x60] sm:$0xff]
        %v1253 = vld [vmem:[%s300 + $0x68] sm:$0xff]
        %v1254 = vld [vmem:[%s300 + $0x80] sm:$0xff]
        %v1255 = vld [vmem:[%s300 + $0x88] sm:$0xff]
        %v1256 = vld [vmem:[%s300 + $0xa0] sm:$0xff]
        %v1257 = vld [vmem:[%s300 + $0xa8] sm:$0xff]
        %v1258 = vld [vmem:[%s300 + $0xc0] sm:$0xff]
        %v1259 = vld [vmem:[%s300 + $0xc8] sm:$0xff]
        %v1260 = vld [vmem:[%s300 + $0xe0] sm:$0xff]
        %v1261 = vld [vmem:[%s300 + $0xe8] sm:$0xff]
        %v1262 = vadd.f32 %v1246, %v1247
        %1263 = vadd.xlane.f32.xlu0 %v1262
        %v1264 = vpop.xlane.xlu0 %1263
        %v1265 = vadd.f32 %v1248, %v1249
        %1266 = vadd.xlane.f32.xlu0 %v1265
        %v1267 = vpop.xlane.xlu0 %1266
        %v1268 = vadd.f32 %v1250, %v1251
        %1269 = vadd.xlane.f32.xlu0 %v1268
        %v1270 = vpop.xlane.xlu0 %1269
        %v1271 = vadd.f32 %v1252, %v1253
        %1272 = vadd.xlane.f32.xlu0 %v1271
        %v1273 = vpop.xlane.xlu0 %1272
        %v1274 = vadd.f32 %v1254, %v1255
        %1275 = vadd.xlane.f32.xlu0 %v1274
        %v1276 = vpop.xlane.xlu0 %1275
        %v1277 = vadd.f32 %v1256, %v1257
        %1278 = vadd.xlane.f32.xlu0 %v1277
        %v1279 = vpop.xlane.xlu0 %1278
        %v1280 = vadd.f32 %v1258, %v1259
        %1281 = vadd.xlane.f32.xlu0 %v1280
        %v1282 = vpop.xlane.xlu0 %1281
        %v1283 = vadd.f32 %v1260, %v1261
        %1284 = vadd.xlane.f32.xlu0 %v1283
        %v1285 = vpop.xlane.xlu0 %1284
        %v1286 = vrcp.pop 256.0
        %v1287 = vmul.f32 %v1264, %v1286
        %v1288 = vmul.f32 %v1267, %v1286
        %v1289 = vmul.f32 %v1270, %v1286
        %v1290 = vmul.f32 %v1273, %v1286
        %v1291 = vmul.f32 %v1276, %v1286
        %v1292 = vmul.f32 %v1279, %v1286
        %v1293 = vmul.f32 %v1282, %v1286
        %v1294 = vmul.f32 %v1285, %v1286
        %v1295 = vmul.f32 %v1221, %v1287
        %v1296 = vmul.f32 %v1222, %v1288
        %v1297 = vmul.f32 %v1223, %v1289
        %v1298 = vmul.f32 %v1224, %v1290
        %v1299 = vmul.f32 %v1225, %v1291
        %v1300 = vmul.f32 %v1226, %v1292
        %v1301 = vmul.f32 %v1227, %v1293
        %v1302 = vmul.f32 %v1228, %v1294
        %vm1303 = vcmask 31744
        %v1304 = vsel %vm1303, %v1295, 0.0
        %v1305 = vsel %vm1303, %v1296, 0.0
        %v1306 = vadd.f32 %v1304, %v1305
        %v1307 = vsel %vm1303, %v1297, 0.0
        %v1308 = vadd.f32 %v1306, %v1307
        %v1309 = vsel %vm1303, %v1298, 0.0
        %v1310 = vadd.f32 %v1308, %v1309
        %v1311 = vsel %vm1303, %v1299, 0.0
        %v1312 = vadd.f32 %v1310, %v1311
        %v1313 = vsel %vm1303, %v1300, 0.0
        %v1314 = vadd.f32 %v1312, %v1313
        %v1315 = vsel %vm1303, %v1301, 0.0
        %v1316 = vadd.f32 %v1314, %v1315
        %v1317 = vsel %vm1303, %v1302, 0.0
        %v1318 = vadd.f32 %v1316, %v1317
        %v1319 = vrot.slane %v1318, 4
        %v1320 = vadd.f32 %v1318, %v1319
        %v1321 = vrot.slane %v1320, 2
        %v1322 = vadd.f32 %v1320, %v1321
        %v1323 = vrot.slane %v1322, 1
        %v1324 = vadd.f32 %v1322, %v1323
        %v1325 = vmul.f32 %v1230, %v1324
        %v1326 = vmul.f32 %v1231, %v1324
        %v1327 = vmul.f32 %v1232, %v1324
        %v1328 = vmul.f32 %v1233, %v1324
        %v1329 = vmul.f32 %v1234, %v1324
        %v1330 = vmul.f32 %v1235, %v1324
        %v1331 = vmul.f32 %v1236, %v1324
        %v1332 = vmul.f32 %v1237, %v1324
        %v1333 = vsel %vm1303, %v1325, 0.0
        %1334 = vadd.xlane.f32.xlu0 %v1333
        %v1335 = vpop.xlane.xlu0 %1334
        %v1336 = vsel %vm1303, %v1326, 0.0
        %1337 = vadd.xlane.f32.xlu0 %v1336
        %v1338 = vpop.xlane.xlu0 %1337
        %v1339 = vsel %vm1303, %v1327, 0.0
        %1340 = vadd.xlane.f32.xlu0 %v1339
        %v1341 = vpop.xlane.xlu0 %1340
        %v1342 = vsel %vm1303, %v1328, 0.0
        %1343 = vadd.xlane.f32.xlu0 %v1342
        %v1344 = vpop.xlane.xlu0 %1343
        %v1345 = vsel %vm1303, %v1329, 0.0
        %1346 = vadd.xlane.f32.xlu0 %v1345
        %v1347 = vpop.xlane.xlu0 %1346
        %v1348 = vsel %vm1303, %v1330, 0.0
        %1349 = vadd.xlane.f32.xlu0 %v1348
        %v1350 = vpop.xlane.xlu0 %1349
        %v1351 = vsel %vm1303, %v1331, 0.0
        %1352 = vadd.xlane.f32.xlu0 %v1351
        %v1353 = vpop.xlane.xlu0 %1352
        %v1354 = vsel %vm1303, %v1332, 0.0
        %1355 = vadd.xlane.f32.xlu0 %v1354
        %v1356 = vpop.xlane.xlu0 %1355
        %v1357 = vadd.f32 %v1335, %v1238
        %v1358 = vadd.f32 %v1338, %v1239
        %v1359 = vadd.f32 %v1341, %v1240
        %v1360 = vadd.f32 %v1344, %v1241
        %v1361 = vadd.f32 %v1347, %v1242
        %v1362 = vadd.f32 %v1350, %v1243
        %v1363 = vadd.f32 %v1353, %v1244
        %v1364 = vadd.f32 %v1356, %v1245
        %1366 = vset.pattern.permute.xlu0 0
        %1367 = vperm.xlu0 %1366, %v1357
        %v1368 = vpop.permute.xlu0 %1367
        %1371 = vset.pattern.permute.xlu0 0
        %1372 = vperm.xlu0 %1371, %v1358
        %v1373 = vpop.permute.xlu0 %1372
        %1376 = vset.pattern.permute.xlu0 0
        %1377 = vperm.xlu0 %1376, %v1359
        %v1378 = vpop.permute.xlu0 %1377
        %1381 = vset.pattern.permute.xlu0 0
        %1382 = vperm.xlu0 %1381, %v1360
        %v1383 = vpop.permute.xlu0 %1382
        %1386 = vset.pattern.permute.xlu0 0
        %1387 = vperm.xlu0 %1386, %v1361
        %v1388 = vpop.permute.xlu0 %1387
        %1391 = vset.pattern.permute.xlu0 0
        %1392 = vperm.xlu0 %1391, %v1362
        %v1393 = vpop.permute.xlu0 %1392
        %1396 = vset.pattern.permute.xlu0 0
        %1397 = vperm.xlu0 %1396, %v1363
        %v1398 = vpop.permute.xlu0 %1397
        %1401 = vset.pattern.permute.xlu0 0
        %1402 = vperm.xlu0 %1401, %v1364
        %v1403 = vpop.permute.xlu0 %1402
        %v1405 = vadd.f32 %v1368, %v1178
        %v1406 = vadd.f32 %v1368, %v1192
        %v1407 = vadd.f32 %v1373, %v1178
        %v1408 = vadd.f32 %v1373, %v1192
        %v1409 = vadd.f32 %v1378, %v1178
        %v1410 = vadd.f32 %v1378, %v1192
        %v1411 = vadd.f32 %v1383, %v1178
        %v1412 = vadd.f32 %v1383, %v1192
        %v1413 = vadd.f32 %v1388, %v1178
        %v1414 = vadd.f32 %v1388, %v1192
        %v1415 = vadd.f32 %v1393, %v1178
        %v1416 = vadd.f32 %v1393, %v1192
        %v1417 = vadd.f32 %v1398, %v1178
        %v1418 = vadd.f32 %v1398, %v1192
        %v1419 = vadd.f32 %v1403, %v1178
        %v1420 = vadd.f32 %v1403, %v1192
        %v1421 = vmul.f32 %v1405, 0.5
        %v1422 = vmul.f32 %v1406, 0.5
        %v1423 = vmul.f32 %v1407, 0.5
        %v1424 = vmul.f32 %v1408, 0.5
        %v1425 = vmul.f32 %v1409, 0.5
        %v1426 = vmul.f32 %v1410, 0.5
        %v1427 = vmul.f32 %v1411, 0.5
        %v1428 = vmul.f32 %v1412, 0.5
        %v1429 = vmul.f32 %v1413, 0.5
        %v1430 = vmul.f32 %v1414, 0.5
        %v1431 = vmul.f32 %v1415, 0.5
        %v1432 = vmul.f32 %v1416, 0.5
        %v1433 = vmul.f32 %v1417, 0.5
        %v1434 = vmul.f32 %v1418, 0.5
        %v1435 = vmul.f32 %v1419, 0.5
        %v1436 = vmul.f32 %v1420, 0.5
        %v1437 = vtanh.pop %v1421
        %v1438 = vtanh.pop %v1422
        %v1439 = vtanh.pop %v1423
        %v1440 = vtanh.pop %v1424
        %v1441 = vtanh.pop %v1425
        %v1442 = vtanh.pop %v1426
        %v1443 = vtanh.pop %v1427
        %v1444 = vtanh.pop %v1428
        %v1445 = vtanh.pop %v1429
        %v1446 = vtanh.pop %v1430
        %v1447 = vtanh.pop %v1431
        %v1448 = vtanh.pop %v1432
        %v1449 = vtanh.pop %v1433
        %v1450 = vtanh.pop %v1434
        %v1451 = vtanh.pop %v1435
        %v1452 = vtanh.pop %v1436
        %v1453 = vmul.f32 %v1437, 0.5
        %v1454 = vmul.f32 %v1438, 0.5
        %v1455 = vmul.f32 %v1439, 0.5
        %v1456 = vmul.f32 %v1440, 0.5
        %v1457 = vmul.f32 %v1441, 0.5
        %v1458 = vmul.f32 %v1442, 0.5
        %v1459 = vmul.f32 %v1443, 0.5
        %v1460 = vmul.f32 %v1444, 0.5
        %v1461 = vmul.f32 %v1445, 0.5
        %v1462 = vmul.f32 %v1446, 0.5
        %v1463 = vmul.f32 %v1447, 0.5
        %v1464 = vmul.f32 %v1448, 0.5
        %v1465 = vmul.f32 %v1449, 0.5
        %v1466 = vmul.f32 %v1450, 0.5
        %v1467 = vmul.f32 %v1451, 0.5
        %v1468 = vmul.f32 %v1452, 0.5
        %v1469 = vadd.f32 %v1453, 1.5
        %v1470 = vadd.f32 %v1454, 1.5
        %v1471 = vadd.f32 %v1455, 1.5
        %v1472 = vadd.f32 %v1456, 1.5
        %v1473 = vadd.f32 %v1457, 1.5
        %v1474 = vadd.f32 %v1458, 1.5
        %v1475 = vadd.f32 %v1459, 1.5
        %v1476 = vadd.f32 %v1460, 1.5
        %v1477 = vadd.f32 %v1461, 1.5
        %v1478 = vadd.f32 %v1462, 1.5
        %v1479 = vadd.f32 %v1463, 1.5
        %v1480 = vadd.f32 %v1464, 1.5
        %v1481 = vadd.f32 %v1465, 1.5
        %v1482 = vadd.f32 %v1466, 1.5
        %v1483 = vadd.f32 %v1467, 1.5
        %v1484 = vadd.f32 %v1468, 1.5
        %v1485 = vmul.f32 %v1246, %v1469
        %v1486 = vmul.f32 %v1247, %v1470
        %v1487 = vmul.f32 %v1248, %v1471
        %v1488 = vmul.f32 %v1249, %v1472
        %v1489 = vmul.f32 %v1250, %v1473
        %v1490 = vmul.f32 %v1251, %v1474
        %v1491 = vmul.f32 %v1252, %v1475
        %v1492 = vmul.f32 %v1253, %v1476
        %v1493 = vmul.f32 %v1254, %v1477
        %v1494 = vmul.f32 %v1255, %v1478
        %v1495 = vmul.f32 %v1256, %v1479
        %v1496 = vmul.f32 %v1257, %v1480
        %v1497 = vmul.f32 %v1258, %v1481
        %v1498 = vmul.f32 %v1259, %v1482
        %v1499 = vmul.f32 %v1260, %v1483
        %v1500 = vmul.f32 %v1261, %v1484
        %1501 = vst [vmem:[%s336] sm:$0xff] %v1485
        %1502 = vst [vmem:[%s336 + $0x8] sm:$0xff] %v1486
        %1503 = vst [vmem:[%s336 + $0x20] sm:$0xff] %v1487
        %1504 = vst [vmem:[%s336 + $0x28] sm:$0xff] %v1488
        %1505 = vst [vmem:[%s336 + $0x40] sm:$0xff] %v1489
        %1506 = vst [vmem:[%s336 + $0x48] sm:$0xff] %v1490
        %1507 = vst [vmem:[%s336 + $0x60] sm:$0xff] %v1491
        %1508 = vst [vmem:[%s336 + $0x68] sm:$0xff] %v1492
        %1509 = vst [vmem:[%s336 + $0x80] sm:$0xff] %v1493
        %1510 = vst [vmem:[%s336 + $0x88] sm:$0xff] %v1494
        %1511 = vst [vmem:[%s336 + $0xa0] sm:$0xff] %v1495
        %1512 = vst [vmem:[%s336 + $0xa8] sm:$0xff] %v1496
        %1513 = vst [vmem:[%s336 + $0xc0] sm:$0xff] %v1497
        %1514 = vst [vmem:[%s336 + $0xc8] sm:$0xff] %v1498
        %1515 = vst [vmem:[%s336 + $0xe0] sm:$0xff] %v1499
        %1516 = vst [vmem:[%s336 + $0xe8] sm:$0xff] %v1500
        %v1517 = vld [vmem:[%s300 + $0x10] sm:$0xff]
        %v1518 = vld [vmem:[%s300 + $0x18] sm:$0xff]
        %v1519 = vld [vmem:[%s300 + $0x30] sm:$0xff]
        %v1520 = vld [vmem:[%s300 + $0x38] sm:$0xff]
        %v1521 = vld [vmem:[%s300 + $0x50] sm:$0xff]
        %v1522 = vld [vmem:[%s300 + $0x58] sm:$0xff]
        %v1523 = vld [vmem:[%s300 + $0x70] sm:$0xff]
        %v1524 = vld [vmem:[%s300 + $0x78] sm:$0xff]
        %v1525 = vld [vmem:[%s300 + $0x90] sm:$0xff]
        %v1526 = vld [vmem:[%s300 + $0x98] sm:$0xff]
        %v1527 = vld [vmem:[%s300 + $0xb0] sm:$0xff]
        %v1528 = vld [vmem:[%s300 + $0xb8] sm:$0xff]
        %v1529 = vld [vmem:[%s300 + $0xd0] sm:$0xff]
        %v1530 = vld [vmem:[%s300 + $0xd8] sm:$0xff]
        %v1531 = vld [vmem:[%s300 + $0xf0] sm:$0xff]
        %v1532 = vld [vmem:[%s300 + $0xf8] sm:$0xff]
        %v1533 = vadd.f32 %v1517, %v1518
        %1534 = vadd.xlane.f32.xlu0 %v1533
        %v1535 = vpop.xlane.xlu0 %1534
        %v1536 = vadd.f32 %v1519, %v1520
        %1537 = vadd.xlane.f32.xlu0 %v1536
        %v1538 = vpop.xlane.xlu0 %1537
        %v1539 = vadd.f32 %v1521, %v1522
        %1540 = vadd.xlane.f32.xlu0 %v1539
        %v1541 = vpop.xlane.xlu0 %1540
        %v1542 = vadd.f32 %v1523, %v1524
        %1543 = vadd.xlane.f32.xlu0 %v1542
        %v1544 = vpop.xlane.xlu0 %1543
        %v1545 = vadd.f32 %v1525, %v1526
        %1546 = vadd.xlane.f32.xlu0 %v1545
        %v1547 = vpop.xlane.xlu0 %1546
        %v1548 = vadd.f32 %v1527, %v1528
        %1549 = vadd.xlane.f32.xlu0 %v1548
        %v1550 = vpop.xlane.xlu0 %1549
        %v1551 = vadd.f32 %v1529, %v1530
        %1552 = vadd.xlane.f32.xlu0 %v1551
        %v1553 = vpop.xlane.xlu0 %1552
        %v1554 = vadd.f32 %v1531, %v1532
        %1555 = vadd.xlane.f32.xlu0 %v1554
        %v1556 = vpop.xlane.xlu0 %1555
        %v1557 = vmul.f32 %v1535, %v1286
        %v1558 = vmul.f32 %v1538, %v1286
        %v1559 = vmul.f32 %v1541, %v1286
        %v1560 = vmul.f32 %v1544, %v1286
        %v1561 = vmul.f32 %v1547, %v1286
        %v1562 = vmul.f32 %v1550, %v1286
        %v1563 = vmul.f32 %v1553, %v1286
        %v1564 = vmul.f32 %v1556, %v1286
        %v1565 = vmul.f32 %v1221, %v1557
        %v1566 = vmul.f32 %v1222, %v1558
        %v1567 = vmul.f32 %v1223, %v1559
        %v1568 = vmul.f32 %v1224, %v1560
        %v1569 = vmul.f32 %v1225, %v1561
        %v1570 = vmul.f32 %v1226, %v1562
        %v1571 = vmul.f32 %v1227, %v1563
        %v1572 = vmul.f32 %v1228, %v1564
        %v1573 = vsel %vm1303, %v1565, 0.0
        %v1574 = vsel %vm1303, %v1566, 0.0
        %v1575 = vadd.f32 %v1573, %v1574
        %v1576 = vsel %vm1303, %v1567, 0.0
        %v1577 = vadd.f32 %v1575, %v1576
        %v1578 = vsel %vm1303, %v1568, 0.0
        %v1579 = vadd.f32 %v1577, %v1578
        %v1580 = vsel %vm1303, %v1569, 0.0
        %v1581 = vadd.f32 %v1579, %v1580
        %v1582 = vsel %vm1303, %v1570, 0.0
        %v1583 = vadd.f32 %v1581, %v1582
        %v1584 = vsel %vm1303, %v1571, 0.0
        %v1585 = vadd.f32 %v1583, %v1584
        %v1586 = vsel %vm1303, %v1572, 0.0
        %v1587 = vadd.f32 %v1585, %v1586
        %v1588 = vrot.slane %v1587, 4
        %v1589 = vadd.f32 %v1587, %v1588
        %v1590 = vrot.slane %v1589, 2
        %v1591 = vadd.f32 %v1589, %v1590
        %v1592 = vrot.slane %v1591, 1
        %v1593 = vadd.f32 %v1591, %v1592
        %v1594 = vmul.f32 %v1230, %v1593
        %v1595 = vmul.f32 %v1231, %v1593
        %v1596 = vmul.f32 %v1232, %v1593
        %v1597 = vmul.f32 %v1233, %v1593
        %v1598 = vmul.f32 %v1234, %v1593
        %v1599 = vmul.f32 %v1235, %v1593
        %v1600 = vmul.f32 %v1236, %v1593
        %v1601 = vmul.f32 %v1237, %v1593
        %v1602 = vsel %vm1303, %v1594, 0.0
        %1603 = vadd.xlane.f32.xlu0 %v1602
        %v1604 = vpop.xlane.xlu0 %1603
        %v1605 = vsel %vm1303, %v1595, 0.0
        %1606 = vadd.xlane.f32.xlu0 %v1605
        %v1607 = vpop.xlane.xlu0 %1606
        %v1608 = vsel %vm1303, %v1596, 0.0
        %1609 = vadd.xlane.f32.xlu0 %v1608
        %v1610 = vpop.xlane.xlu0 %1609
        %v1611 = vsel %vm1303, %v1597, 0.0
        %1612 = vadd.xlane.f32.xlu0 %v1611
        %v1613 = vpop.xlane.xlu0 %1612
        %v1614 = vsel %vm1303, %v1598, 0.0
        %1615 = vadd.xlane.f32.xlu0 %v1614
        %v1616 = vpop.xlane.xlu0 %1615
        %v1617 = vsel %vm1303, %v1599, 0.0
        %1618 = vadd.xlane.f32.xlu0 %v1617
        %v1619 = vpop.xlane.xlu0 %1618
        %v1620 = vsel %vm1303, %v1600, 0.0
        %1621 = vadd.xlane.f32.xlu0 %v1620
        %v1622 = vpop.xlane.xlu0 %1621
        %v1623 = vsel %vm1303, %v1601, 0.0
        %1624 = vadd.xlane.f32.xlu0 %v1623
        %v1625 = vpop.xlane.xlu0 %1624
        %v1626 = vadd.f32 %v1604, %v1238
        %v1627 = vadd.f32 %v1607, %v1239
        %v1628 = vadd.f32 %v1610, %v1240
        %v1629 = vadd.f32 %v1613, %v1241
        %v1630 = vadd.f32 %v1616, %v1242
        %v1631 = vadd.f32 %v1619, %v1243
        %v1632 = vadd.f32 %v1622, %v1244
        %v1633 = vadd.f32 %v1625, %v1245
        %1635 = vset.pattern.permute.xlu0 0
        %1636 = vperm.xlu0 %1635, %v1626
        %v1637 = vpop.permute.xlu0 %1636
        %1640 = vset.pattern.permute.xlu0 0
        %1641 = vperm.xlu0 %1640, %v1627
        %v1642 = vpop.permute.xlu0 %1641
        %1645 = vset.pattern.permute.xlu0 0
        %1646 = vperm.xlu0 %1645, %v1628
        %v1647 = vpop.permute.xlu0 %1646
        %1650 = vset.pattern.permute.xlu0 0
        %1651 = vperm.xlu0 %1650, %v1629
        %v1652 = vpop.permute.xlu0 %1651
        %1655 = vset.pattern.permute.xlu0 0
        %1656 = vperm.xlu0 %1655, %v1630
        %v1657 = vpop.permute.xlu0 %1656
        %1660 = vset.pattern.permute.xlu0 0
        %1661 = vperm.xlu0 %1660, %v1631
        %v1662 = vpop.permute.xlu0 %1661
        %1665 = vset.pattern.permute.xlu0 0
        %1666 = vperm.xlu0 %1665, %v1632
        %v1667 = vpop.permute.xlu0 %1666
        %1670 = vset.pattern.permute.xlu0 0
        %1671 = vperm.xlu0 %1670, %v1633
        %v1672 = vpop.permute.xlu0 %1671
        %v1674 = vadd.f32 %v1637, %v1206
        %v1675 = vadd.f32 %v1637, %v1220
        %v1676 = vadd.f32 %v1642, %v1206
        %v1677 = vadd.f32 %v1642, %v1220
        %v1678 = vadd.f32 %v1647, %v1206
        %v1679 = vadd.f32 %v1647, %v1220
        %v1680 = vadd.f32 %v1652, %v1206
        %v1681 = vadd.f32 %v1652, %v1220
        %v1682 = vadd.f32 %v1657, %v1206
        %v1683 = vadd.f32 %v1657, %v1220
        %v1684 = vadd.f32 %v1662, %v1206
        %v1685 = vadd.f32 %v1662, %v1220
        %v1686 = vadd.f32 %v1667, %v1206
        %v1687 = vadd.f32 %v1667, %v1220
        %v1688 = vadd.f32 %v1672, %v1206
        %v1689 = vadd.f32 %v1672, %v1220
        %v1690 = vmul.f32 %v1674, 0.5
        %v1691 = vmul.f32 %v1675, 0.5
        %v1692 = vmul.f32 %v1676, 0.5
        %v1693 = vmul.f32 %v1677, 0.5
        %v1694 = vmul.f32 %v1678, 0.5
        %v1695 = vmul.f32 %v1679, 0.5
        %v1696 = vmul.f32 %v1680, 0.5
        %v1697 = vmul.f32 %v1681, 0.5
        %v1698 = vmul.f32 %v1682, 0.5
        %v1699 = vmul.f32 %v1683, 0.5
        %v1700 = vmul.f32 %v1684, 0.5
        %v1701 = vmul.f32 %v1685, 0.5
        %v1702 = vmul.f32 %v1686, 0.5
        %v1703 = vmul.f32 %v1687, 0.5
        %v1704 = vmul.f32 %v1688, 0.5
        %v1705 = vmul.f32 %v1689, 0.5
        %v1706 = vtanh.pop %v1690
        %v1707 = vtanh.pop %v1691
        %v1708 = vtanh.pop %v1692
        %v1709 = vtanh.pop %v1693
        %v1710 = vtanh.pop %v1694
        %v1711 = vtanh.pop %v1695
        %v1712 = vtanh.pop %v1696
        %v1713 = vtanh.pop %v1697
        %v1714 = vtanh.pop %v1698
        %v1715 = vtanh.pop %v1699
        %v1716 = vtanh.pop %v1700
        %v1717 = vtanh.pop %v1701
        %v1718 = vtanh.pop %v1702
        %v1719 = vtanh.pop %v1703
        %v1720 = vtanh.pop %v1704
        %v1721 = vtanh.pop %v1705
        %v1722 = vmul.f32 %v1706, 0.5
        %v1723 = vmul.f32 %v1707, 0.5
        %v1724 = vmul.f32 %v1708, 0.5
        %v1725 = vmul.f32 %v1709, 0.5
        %v1726 = vmul.f32 %v1710, 0.5
        %v1727 = vmul.f32 %v1711, 0.5
        %v1728 = vmul.f32 %v1712, 0.5
        %v1729 = vmul.f32 %v1713, 0.5
        %v1730 = vmul.f32 %v1714, 0.5
        %v1731 = vmul.f32 %v1715, 0.5
        %v1732 = vmul.f32 %v1716, 0.5
        %v1733 = vmul.f32 %v1717, 0.5
        %v1734 = vmul.f32 %v1718, 0.5
        %v1735 = vmul.f32 %v1719, 0.5
        %v1736 = vmul.f32 %v1720, 0.5
        %v1737 = vmul.f32 %v1721, 0.5
        %v1738 = vadd.f32 %v1722, 1.5
        %v1739 = vadd.f32 %v1723, 1.5
        %v1740 = vadd.f32 %v1724, 1.5
        %v1741 = vadd.f32 %v1725, 1.5
        %v1742 = vadd.f32 %v1726, 1.5
        %v1743 = vadd.f32 %v1727, 1.5
        %v1744 = vadd.f32 %v1728, 1.5
        %v1745 = vadd.f32 %v1729, 1.5
        %v1746 = vadd.f32 %v1730, 1.5
        %v1747 = vadd.f32 %v1731, 1.5
        %v1748 = vadd.f32 %v1732, 1.5
        %v1749 = vadd.f32 %v1733, 1.5
        %v1750 = vadd.f32 %v1734, 1.5
        %v1751 = vadd.f32 %v1735, 1.5
        %v1752 = vadd.f32 %v1736, 1.5
        %v1753 = vadd.f32 %v1737, 1.5
        %v1754 = vmul.f32 %v1517, %v1738
        %v1755 = vmul.f32 %v1518, %v1739
        %v1756 = vmul.f32 %v1519, %v1740
        %v1757 = vmul.f32 %v1520, %v1741
        %v1758 = vmul.f32 %v1521, %v1742
        %v1759 = vmul.f32 %v1522, %v1743
        %v1760 = vmul.f32 %v1523, %v1744
        %v1761 = vmul.f32 %v1524, %v1745
        %v1762 = vmul.f32 %v1525, %v1746
        %v1763 = vmul.f32 %v1526, %v1747
        %v1764 = vmul.f32 %v1527, %v1748
        %v1765 = vmul.f32 %v1528, %v1749
        %v1766 = vmul.f32 %v1529, %v1750
        %v1767 = vmul.f32 %v1530, %v1751
        %v1768 = vmul.f32 %v1531, %v1752
        %v1769 = vmul.f32 %v1532, %v1753
        %1770 = vst [vmem:[%s336 + $0x10] sm:$0xff] %v1754
        %1771 = vst [vmem:[%s336 + $0x18] sm:$0xff] %v1755
        %1772 = vst [vmem:[%s336 + $0x30] sm:$0xff] %v1756
        %1773 = vst [vmem:[%s336 + $0x38] sm:$0xff] %v1757
        %1774 = vst [vmem:[%s336 + $0x50] sm:$0xff] %v1758
        %1775 = vst [vmem:[%s336 + $0x58] sm:$0xff] %v1759
        %1776 = vst [vmem:[%s336 + $0x70] sm:$0xff] %v1760
        %1777 = vst [vmem:[%s336 + $0x78] sm:$0xff] %v1761
        %1778 = vst [vmem:[%s336 + $0x90] sm:$0xff] %v1762
        %1779 = vst [vmem:[%s336 + $0x98] sm:$0xff] %v1763
        %1780 = vst [vmem:[%s336 + $0xb0] sm:$0xff] %v1764
        %1781 = vst [vmem:[%s336 + $0xb8] sm:$0xff] %v1765
        %1782 = vst [vmem:[%s336 + $0xd0] sm:$0xff] %v1766
        %1783 = vst [vmem:[%s336 + $0xd8] sm:$0xff] %v1767
        %1784 = vst [vmem:[%s336 + $0xf0] sm:$0xff] %v1768
        %1785 = vst [vmem:[%s336 + $0xf8] sm:$0xff] %v1769
        %s1786 = sand.u32 %s207, 1
        %s1787 = scalar_lea.sflag [#allocation5], %s1786
        %s1788 = sand.u32 %s207, 1
        %s1789 = smul.addr %s1788, 256
        %s1790 = scalar_lea.vmem [#allocation8], %s1789
        // Predicated region
        $region61: #{tpu_custom_call.1} parent=51 // pred_check
          %p1791 = pneg %p217
        $region62: #{tpu_custom_call.1} parent=51 // pred_check_branch
          %1793 = sbr.rel (%p1791) target = $region64
        $region63: #{tpu_custom_call.1} parent=51 // pred_region
          %s1795 = ssub.s32 4096, 4096
          %1796 = vsyncadd %s1787, %s1795
          %s1797 = smul.addr %s26, 32
          %s1798 = smul.addr %s1797, 128
          %s1799 = scalar_lea.hbm %s8, %s1798
          %s1800 = sshll.u32 %s1790, 4
          %s1801 = int_to_ptr.vmem [resolvable:$true] %s1800
          %1806 = dma.vmem_to_hbm [thread:$0]  %s1801, 4096, %s1799, %s1787, 512, 512, 32
        $region64: #{tpu_custom_call.1} parent=51 // pred_fallthru
          _
      $region52: #{tpu_custom_call.1} parent=5 // pred_fallthru
        _
      %p1807 = scmp.le.s32.totalorder 2, %s21
      // Predicated region
      $region65: #{tpu_custom_call.1} parent=5 // pred_check
        %p1808 = pneg %p1807
      $region66: #{tpu_custom_call.1} parent=5 // pred_check_branch
        %1810 = sbr.rel (%p1808) target = $region68
      $region67: #{tpu_custom_call.1} parent=5 // pred_region
        %s1811 = ssub.s32 %s21, 2
        // Predicated region
        $region69: #{tpu_custom_call.1} parent=67 // pred_check
          %p1812 = pneg %p223
        $region70: #{tpu_custom_call.1} parent=67 // pred_check_branch
          %1814 = sbr.rel (%p1812) target = $region72
        $region71: #{tpu_custom_call.1} parent=67 // pred_region
          %s1815 = sand.u32 %s208, 1
          %s1816 = scalar_lea.sflag [#allocation5], %s1815
          %s1817 = sand.u32 %s208, 1
          %s1818 = smul.addr %s1817, 256
          %s1819 = scalar_lea.vmem [#allocation8], %s1818
          %1820 = dma.done %s1816, 4096
        $region72: #{tpu_custom_call.1} parent=67 // pred_fallthru
          _
      $region68: #{tpu_custom_call.1} parent=5 // pred_fallthru
        _
    $region6: #{tpu_custom_call.1} parent=1 // loop_footer
      %s25 = sadd.s32 1, %s21
    $region7: #{tpu_custom_call.1} parent=1 // loop_footer_branch
      %20 = sbr.rel target = $region3
    $region8: #{tpu_custom_call.1} parent=1 // loop_exit
      _
    %1821 = vsyncpa [#allocation4], 1
    %s1822 = scalar_lea.sflag [#allocation4], 1
    %1823 = vsyncpa %s1822, 1
    %1824 = vsyncpa [#allocation7], 1
    %1825 = vsyncpa [#allocation5], 1
    %s1826 = scalar_lea.sflag [#allocation5], 1
    %1827 = vsyncpa %s1826, 1

</llo_original>
